<compile_context>
chip_gen: v5e
topology: v5e:2x2
jax: 0.10.0
libtpu: 0.0.40
codegen_flags: <defaults>
</compile_context>

<pallas_src>
import functools

import jax
import jax.numpy as jnp
from jax import lax
from jax.experimental import pallas as pl
from jax.experimental.pallas import tpu as pltpu


def _lstm_fc_kernel(x_ref,      # (T, B, I)    time-major input, f32
                    wih0_ref,   # (I, 4H)      layer-0 input weights (mxu dtype)
                    whh0_ref,   # (H, 4H)      layer-0 recurrent weights (mxu dtype)
                    b0_ref,     # (1, 4H)      layer-0 bias (b_ih + b_hh), f32
                    wih1_ref,   # (H, 4H)      layer-1 input weights (mxu dtype)
                    whh1_ref,   # (H, 4H)      layer-1 recurrent weights (mxu dtype)
                    b1_ref,     # (1, 4H)      layer-1 bias (b_ih + b_hh), f32
                    fcw_ref,    # (H, O_pad)   FC weight, zero-padded lanes (mxu dtype)
                    fcb_ref,    # (1, O_pad)   FC bias, zero-padded lanes, f32
                    out_ref,    # (T*B, O_pad) lane-dense output, f32
                    xp_ref,     # scratch (T, B, 4H) f32: precomputed layer-0 input proj
                    hseq_ref,   # scratch (T, B, H)  f32: layer-1 hidden states
                    *, mxu_dtype):
    T, B, I = x_ref.shape
    H = whh0_ref.shape[0]
    G = 4 * H

    # ---- Phase 1: layer-0 input projection for ALL timesteps as one big
    # (T*B, I) @ (I, 4H) matmul, layer-0 bias folded in.  Off the serial path.
    x_all = x_ref[...].reshape(T * B, I).astype(mxu_dtype)
    xp = jnp.dot(x_all, wih0_ref[...], preferred_element_type=jnp.float32)
    xp_ref[...] = (xp + b0_ref[...]).reshape(T, B, G)

    # Hoist weight loads / bias broadcast out of the recurrence
    # (JAX does not CSE broadcast_in_dim; do it once, not T times).
    whh0 = whh0_ref[...]
    wih1 = wih1_ref[...]
    whh1 = whh1_ref[...]
    b1 = jnp.broadcast_to(b1_ref[...], (B, G))

    def gate_math(g, c):
        # g: (B, 4H) f32 packed as [ i | f | g | o ] along lanes.
        # One full-width sigmoid + one full-width tanh (2 EUP pushes), then
        # XLU rolls realign the f/g/o blocks to lane 0 for the (B, H) math.
        s = jax.nn.sigmoid(g)
        tg = jnp.tanh(g)
        i_g = s[:, :H]
        f_g = pltpu.roll(s, G - H, axis=1)[:, :H]
        g_g = pltpu.roll(tg, G - 2 * H, axis=1)[:, :H]
        o_g = pltpu.roll(s, G - 3 * H, axis=1)[:, :H]
        c_new = f_g * c + i_g * g_g
        h_new = o_g * jnp.tanh(c_new)
        return h_new, c_new

    zeros = jnp.zeros((B, H), jnp.float32)

    # ---- Phase 2: skewed serial recurrence.
    # Prologue: layer-0 cell for t=0 (h0[-1]=0 => recurrent term vanishes).
    h0, c0 = gate_math(xp_ref[0], zeros)

    def step(t, carry):
        h0, c0, h1, c1 = carry
        h0_m = h0.astype(mxu_dtype)
        h1_m = h1.astype(mxu_dtype)
        # layer-1 gates for step t and layer-0 gates for step t+1 are mutually
        # independent: all three MXU pushes can issue back-to-back.
        g1 = (jnp.dot(h0_m, wih1, preferred_element_type=jnp.float32)
              + jnp.dot(h1_m, whh1, preferred_element_type=jnp.float32)
              + b1)
        g0 = xp_ref[t + 1] + jnp.dot(h0_m, whh0,
                                     preferred_element_type=jnp.float32)
        h1, c1 = gate_math(g1, c1)       # layer-1, step t
        hseq_ref[t] = h1
        h0, c0 = gate_math(g0, c0)       # layer-0, step t+1
        return (h0, c0, h1, c1)

    # Full unroll is fine at small T; see TODO above for large T.
    h0, c0, h1, c1 = lax.fori_loop(0, T - 1, step, (h0, c0, zeros, zeros),
                                   unroll=True)

    # Epilogue: layer-1 cell for the last timestep.
    g1 = (jnp.dot(h0.astype(mxu_dtype), wih1,
                  preferred_element_type=jnp.float32)
          + jnp.dot(h1.astype(mxu_dtype), whh1,
                    preferred_element_type=jnp.float32)
          + b1)
    h1, c1 = gate_math(g1, c1)
    hseq_ref[T - 1] = h1

    # ---- Phase 3: FC head over all timesteps as one (T*B, H) @ (H, O_pad)
    # matmul.  O_pad = 128 lanes => every store is a full, unmasked vreg store.
    h_all = hseq_ref[...].reshape(T * B, H).astype(mxu_dtype)
    y = (jnp.dot(h_all, fcw_ref[...], preferred_element_type=jnp.float32)
         + fcb_ref[...])
    out_ref[...] = y.astype(out_ref.dtype)


def rnn_forward(x_btd, params, *, mxu_dtype=jnp.bfloat16):
    """x_btd: (B, T, I) float32, batch-first like the PyTorch module."""
    B, T, I = x_btd.shape
    H = params["whh0"].shape[0]
    O = params["fcw"].shape[1]
    G = 4 * H

    # Pad batch to a multiple of 8 so every (B, feat) f32 tile fills all
    # sublanes.  Activations stay f32 (only MXU operands are cast), so 8 (not
    # 16) is the right padding even on the bf16 path.
    B_pad = ((B + 7) // 8) * 8
    if B_pad != B:
        x_btd = jnp.pad(x_btd, ((0, B_pad - B), (0, 0), (0, 0)))

    # Time-major layout inside the kernel: x_ref[t] is a contiguous (B, I) tile.
    x_tbd = jnp.transpose(x_btd, (1, 0, 2))

    # Lane-dense FC epilogue: zero-pad the FC weight/bias to 128 output lanes.
    O_pad = max(128, ((O + 127) // 128) * 128)
    fcw_p = jnp.zeros((H, O_pad), jnp.float32).at[:, :O].set(params["fcw"])
    fcb_p = jnp.zeros((1, O_pad), jnp.float32).at[:, :O].set(params["fcb"])

    # Pre-cast MXU operands (weights) once in the wrapper; f32 accumulation is
    # requested at every dot via preferred_element_type.
    wd = mxu_dtype
    inputs = (x_tbd,
              params["wih0"].astype(wd), params["whh0"].astype(wd),
              params["b0"],
              params["wih1"].astype(wd), params["whh1"].astype(wd),
              params["b1"],
              fcw_p.astype(wd), fcb_p)

    vmem = pl.BlockSpec(memory_space=pltpu.MemorySpace.VMEM)
    kernel = functools.partial(_lstm_fc_kernel, mxu_dtype=mxu_dtype)

    out_flat = pl.pallas_call(
        kernel,
        out_shape=jax.ShapeDtypeStruct((T * B_pad, O_pad), jnp.float32),
        in_specs=[vmem] * len(inputs),
        out_specs=vmem,
        scratch_shapes=[
            pltpu.VMEM((T, B_pad, G), jnp.float32),   # layer-0 input proj
            pltpu.VMEM((T, B_pad, H), jnp.float32),   # layer-1 h sequence
        ],
        compiler_params=pltpu.CompilerParams(
            vmem_limit_bytes=32 * 1024 * 1024),
    )(*inputs)

    # Undo padding / layout next to the existing transpose+slice.
    y = out_flat.reshape(T, B_pad, O_pad)[:, :B, :O]   # (T, B, O)
    y = jnp.transpose(y, (1, 0, 2))                    # (B, T, O)
    return jnp.squeeze(y)                              # mirror `.squeeze()`


def init_params(key, input_size, hidden_size):
    """PyTorch-style init: U(-1/sqrt(H), 1/sqrt(H)); gate order i,f,g,o.

    Weights are stored pre-transposed for the kernel:
      wih_l : (in_l, 4H),  whh_l : (H, 4H),  b_l = b_ih + b_hh : (1, 4H)
      fcw   : (H, O),      fcb   : (1, O)
    """
    H, I, O = hidden_size, input_size, input_size
    k = 1.0 / jnp.sqrt(jnp.float32(H))
    keys = jax.random.split(key, 10)

    def u(kk, shape):
        return jax.random.uniform(kk, shape, jnp.float32, -k, k)

    return {
        "wih0": u(keys[0], (I, 4 * H)),
        "whh0": u(keys[1], (H, 4 * H)),
        "b0":   u(keys[2], (1, 4 * H)) + u(keys[3], (1, 4 * H)),
        "wih1": u(keys[4], (H, 4 * H)),
        "whh1": u(keys[5], (H, 4 * H)),
        "b1":   u(keys[6], (1, 4 * H)) + u(keys[7], (1, 4 * H)),
        "fcw":  u(keys[8], (H, O)),
        "fcb":  u(keys[9], (1, O)),
    }


def _reference_forward(x_btd, params):
    """Pure-JAX f32 reference of the same LSTM+Linear forward (verification)."""
    B, T, I = x_btd.shape
    H = params["whh0"].shape[0]

    def cell(x_t, h, c, wih, whh, b):
        g = x_t @ wih + h @ whh + b
        i = jax.nn.sigmoid(g[:, 0 * H:1 * H])
        f = jax.nn.sigmoid(g[:, 1 * H:2 * H])
        gg = jnp.tanh(g[:, 2 * H:3 * H])
        o = jax.nn.sigmoid(g[:, 3 * H:4 * H])
        c = f * c + i * gg
        return o * jnp.tanh(c), c

    h0 = c0 = h1 = c1 = jnp.zeros((B, H), jnp.float32)
    ys = []
    for t in range(T):
        x_t = x_btd[:, t, :]
        h0, c0 = cell(x_t, h0, c0, params["wih0"], params["whh0"], params["b0"])
        h1, c1 = cell(h0, h1, c1, params["wih1"], params["whh1"], params["b1"])
        ys.append(h1 @ params["fcw"] + params["fcb"])
    y = jnp.stack(ys, axis=1)  # (B, T, O)
    return jnp.squeeze(y)


if __name__ == "__main__":
    # Small shapes consistent with the module's forward: (batch, seq, input_size)
    B, T, I, H = 2, 8, 16, 32

    key = jax.random.PRNGKey(0)
    k_x, k_p = jax.random.split(key)
    x = jax.random.normal(k_x, (B, T, I), jnp.float32)
    params = init_params(k_p, input_size=I, hidden_size=H)

    ref = _reference_forward(x, params)

    # f32 MXU path: tight check of the restructured kernel (skewed recurrence,
    # roll-based full-width gate math, lane-dense FC epilogue).
    out_f32 = jax.block_until_ready(rnn_forward(x, params, mxu_dtype=jnp.float32))
    assert out_f32.shape == (B, T, I)
    assert jnp.allclose(out_f32, ref, rtol=1e-4, atol=1e-4)

    # bf16-MXU-operand path (per-generation perf recommendation); f32
    # accumulation everywhere, looser tolerance for the bf16 recurrent feedback.
    out_bf16 = jax.block_until_ready(rnn_forward(x, params, mxu_dtype=jnp.bfloat16))
    assert out_bf16.shape == (B, T, I)
    assert jnp.allclose(out_bf16, ref, rtol=3e-2, atol=3e-2)

    print("KERNEL_OK")
</pallas_src>

<mosaic_0001>
module attributes {stable_mosaic.version = 11 : i64} {
  func.func @_lstm_fc_kernel(%arg0: memref<8x8x16xf32, #tpu.memory_space<vmem>>, %arg1: memref<16x128xf32, #tpu.memory_space<vmem>>, %arg2: memref<32x128xf32, #tpu.memory_space<vmem>>, %arg3: memref<1x128xf32, #tpu.memory_space<vmem>>, %arg4: memref<32x128xf32, #tpu.memory_space<vmem>>, %arg5: memref<32x128xf32, #tpu.memory_space<vmem>>, %arg6: memref<1x128xf32, #tpu.memory_space<vmem>>, %arg7: memref<32x128xf32, #tpu.memory_space<vmem>>, %arg8: memref<1x128xf32, #tpu.memory_space<vmem>>, %arg9: memref<64x128xf32, #tpu.memory_space<vmem>>, %arg10: memref<8x8x128xf32, #tpu.memory_space<vmem>>, %arg11: memref<8x8x32xf32, #tpu.memory_space<vmem>>) attributes {dimension_semantics = [], scalar_prefetch = 0 : i64, scratch_operands = 2 : i64, tpu.core_type = #tpu.core_type<tc>} {
    %c0 = arith.constant 0 : index
    %c0_0 = arith.constant 0 : index
    %c0_1 = arith.constant 0 : index
    %0 = vector.load %arg0[%c0, %c0_0, %c0_1] : memref<8x8x16xf32, #tpu.memory_space<vmem>>, vector<8x8x16xf32>
    %1 = vector.shape_cast %0 : vector<8x8x16xf32> to vector<64x16xf32>
    %c0_2 = arith.constant 0 : index
    %c0_3 = arith.constant 0 : index
    %2 = vector.load %arg1[%c0_2, %c0_3] : memref<16x128xf32, #tpu.memory_space<vmem>>, vector<16x128xf32>
    %cst = arith.constant dense<0.000000e+00> : vector<64x128xf32>
    %3 = tpu.matmul %1, %2, %cst {dimension_numbers = #tpu.dot_dimension_numbers<[1], [0], [0], [1], [0, 0, 1, 1], [], []>} : vector<64x16xf32>, vector<16x128xf32>, vector<64x128xf32> -> vector<64x128xf32>
    %c0_4 = arith.constant 0 : index
    %c0_5 = arith.constant 0 : index
    %4 = vector.load %arg3[%c0_4, %c0_5] : memref<1x128xf32, #tpu.memory_space<vmem>>, vector<1x128xf32>
    %5 = vector.broadcast %4 : vector<1x128xf32> to vector<64x128xf32>
    %6 = arith.addf %3, %5 : vector<64x128xf32>
    %7 = vector.shape_cast %6 : vector<64x128xf32> to vector<8x8x128xf32>
    %c0_6 = arith.constant 0 : index
    %c0_7 = arith.constant 0 : index
    %c0_8 = arith.constant 0 : index
    %8 = vector.load %arg10[%c0_6, %c0_7, %c0_8] : memref<8x8x128xf32, #tpu.memory_space<vmem>>, vector<8x8x128xf32>
    tpu.vector_store %arg10[%c0_6, %c0_7, %c0_8], %7 {strides = array<i32>} : memref<8x8x128xf32, #tpu.memory_space<vmem>>, vector<8x8x128xf32>,
    %c0_9 = arith.constant 0 : index
    %c0_10 = arith.constant 0 : index
    %9 = vector.load %arg2[%c0_9, %c0_10] : memref<32x128xf32, #tpu.memory_space<vmem>>, vector<32x128xf32>
    %c0_11 = arith.constant 0 : index
    %c0_12 = arith.constant 0 : index
    %10 = vector.load %arg4[%c0_11, %c0_12] : memref<32x128xf32, #tpu.memory_space<vmem>>, vector<32x128xf32>
    %c0_13 = arith.constant 0 : index
    %c0_14 = arith.constant 0 : index
    %11 = vector.load %arg5[%c0_13, %c0_14] : memref<32x128xf32, #tpu.memory_space<vmem>>, vector<32x128xf32>
    %c0_15 = arith.constant 0 : index
    %c0_16 = arith.constant 0 : index
    %12 = vector.load %arg6[%c0_15, %c0_16] : memref<1x128xf32, #tpu.memory_space<vmem>>, vector<1x128xf32>
    %13 = vector.shape_cast %12 : vector<1x128xf32> to vector<1x128xf32>
    %14 = vector.broadcast %13 : vector<1x128xf32> to vector<8x128xf32>
    %cst_17 = arith.constant 0.000000e+00 : f32
    %15 = vector.broadcast %cst_17 : f32 to vector<8x32xf32>
    %c0_18 = arith.constant 0 : index
    %c0_19 = arith.constant 0 : index
    %c0_20 = arith.constant 0 : index
    %16 = vector.load %arg10[%c0_18, %c0_19, %c0_20] : memref<8x8x128xf32, #tpu.memory_space<vmem>>, vector<1x8x128xf32>
    %17 = vector.shape_cast %16 : vector<1x8x128xf32> to vector<8x128xf32>
    %18 = arith.negf %17 : vector<8x128xf32>
    %19 = math.exp %18 : vector<8x128xf32>
    %cst_21 = arith.constant 1.000000e+00 : f32
    %20 = vector.broadcast %cst_21 : f32 to vector<8x128xf32>
    %21 = arith.addf %20, %19 : vector<8x128xf32>
    %22 = arith.divf %20, %21 : vector<8x128xf32>
    %23 = math.tanh %17 : vector<8x128xf32>
    %24 = vector.extract_strided_slice %22 {offsets = [0, 0], sizes = [8, 32], strides = [1, 1]} : vector<8x128xf32> to vector<8x32xf32>
    %c96_i32 = arith.constant 96 : i32
    %25 = tpu.dynamic_rotate %22 by %c96_i32 dim 1 : vector<8x128xf32>, i32 -> vector<8x128xf32>
    %26 = vector.extract_strided_slice %25 {offsets = [0, 0], sizes = [8, 32], strides = [1, 1]} : vector<8x128xf32> to vector<8x32xf32>
    %c64_i32 = arith.constant 64 : i32
    %27 = tpu.dynamic_rotate %23 by %c64_i32 dim 1 : vector<8x128xf32>, i32 -> vector<8x128xf32>
    %28 = vector.extract_strided_slice %27 {offsets = [0, 0], sizes = [8, 32], strides = [1, 1]} : vector<8x128xf32> to vector<8x32xf32>
    %c32_i32 = arith.constant 32 : i32
    %29 = tpu.dynamic_rotate %22 by %c32_i32 dim 1 : vector<8x128xf32>, i32 -> vector<8x128xf32>
    %30 = vector.extract_strided_slice %29 {offsets = [0, 0], sizes = [8, 32], strides = [1, 1]} : vector<8x128xf32> to vector<8x32xf32>
    %31 = arith.mulf %26, %15 : vector<8x32xf32>
    %32 = arith.mulf %24, %28 : vector<8x32xf32>
    %33 = arith.addf %31, %32 : vector<8x32xf32>
    %34 = math.tanh %33 : vector<8x32xf32>
    %35 = arith.mulf %30, %34 : vector<8x32xf32>
    %c0_i32 = arith.constant 0 : i32
    %cst_22 = arith.constant dense<0.000000e+00> : vector<8x128xf32>
    %36 = tpu.matmul %35, %10, %cst_22 {dimension_numbers = #tpu.dot_dimension_numbers<[1], [0], [0], [1], [0, 0, 1, 1], [], []>} : vector<8x32xf32>, vector<32x128xf32>, vector<8x128xf32> -> vector<8x128xf32>
    %cst_23 = arith.constant dense<0.000000e+00> : vector<8x128xf32>
    %37 = tpu.matmul %15, %11, %cst_23 {dimension_numbers = #tpu.dot_dimension_numbers<[1], [0], [0], [1], [0, 0, 1, 1], [], []>} : vector<8x32xf32>, vector<32x128xf32>, vector<8x128xf32> -> vector<8x128xf32>
    %38 = arith.addf %36, %37 : vector<8x128xf32>
    %39 = arith.addf %38, %14 : vector<8x128xf32>
    %c1_i32 = arith.constant 1 : i32
    %40 = arith.addi %c0_i32, %c1_i32 : i32
    %41 = arith.index_cast %40 : i32 to index
    %c0_24 = arith.constant 0 : index
    %c0_25 = arith.constant 0 : index
    %42 = vector.load %arg10[%41, %c0_24, %c0_25] : memref<8x8x128xf32, #tpu.memory_space<vmem>>, vector<1x8x128xf32>
    %43 = vector.shape_cast %42 : vector<1x8x128xf32> to vector<8x128xf32>
    %cst_26 = arith.constant dense<0.000000e+00> : vector<8x128xf32>
    %44 = tpu.matmul %35, %9, %cst_26 {dimension_numbers = #tpu.dot_dimension_numbers<[1], [0], [0], [1], [0, 0, 1, 1], [], []>} : vector<8x32xf32>, vector<32x128xf32>, vector<8x128xf32> -> vector<8x128xf32>
    %45 = arith.addf %43, %44 : vector<8x128xf32>
    %46 = arith.negf %39 : vector<8x128xf32>
    %47 = math.exp %46 : vector<8x128xf32>
    %cst_27 = arith.constant 1.000000e+00 : f32
    %48 = vector.broadcast %cst_27 : f32 to vector<8x128xf32>
    %49 = arith.addf %48, %47 : vector<8x128xf32>
    %50 = arith.divf %48, %49 : vector<8x128xf32>
    %51 = math.tanh %39 : vector<8x128xf32>
    %52 = vector.extract_strided_slice %50 {offsets = [0, 0], sizes = [8, 32], strides = [1, 1]} : vector<8x128xf32> to vector<8x32xf32>
    %c96_i32_28 = arith.constant 96 : i32
    %53 = tpu.dynamic_rotate %50 by %c96_i32_28 dim 1 : vector<8x128xf32>, i32 -> vector<8x128xf32>
    %54 = vector.extract_strided_slice %53 {offsets = [0, 0], sizes = [8, 32], strides = [1, 1]} : vector<8x128xf32> to vector<8x32xf32>
    %c64_i32_29 = arith.constant 64 : i32
    %55 = tpu.dynamic_rotate %51 by %c64_i32_29 dim 1 : vector<8x128xf32>, i32 -> vector<8x128xf32>
    %56 = vector.extract_strided_slice %55 {offsets = [0, 0], sizes = [8, 32], strides = [1, 1]} : vector<8x128xf32> to vector<8x32xf32>
    %c32_i32_30 = arith.constant 32 : i32
    %57 = tpu.dynamic_rotate %50 by %c32_i32_30 dim 1 : vector<8x128xf32>, i32 -> vector<8x128xf32>
    %58 = vector.extract_strided_slice %57 {offsets = [0, 0], sizes = [8, 32], strides = [1, 1]} : vector<8x128xf32> to vector<8x32xf32>
    %59 = arith.mulf %54, %15 : vector<8x32xf32>
    %60 = arith.mulf %52, %56 : vector<8x32xf32>
    %61 = arith.addf %59, %60 : vector<8x32xf32>
    %62 = math.tanh %61 : vector<8x32xf32>
    %63 = arith.mulf %58, %62 : vector<8x32xf32>
    %64 = arith.index_cast %c0_i32 : i32 to index
    %c0_31 = arith.constant 0 : index
    %c0_32 = arith.constant 0 : index
    %65 = vector.load %arg11[%64, %c0_31, %c0_32] : memref<8x8x32xf32, #tpu.memory_space<vmem>>, vector<1x8x32xf32>
    %66 = vector.shape_cast %65 : vector<1x8x32xf32> to vector<8x32xf32>
    %67 = vector.shape_cast %63 : vector<8x32xf32> to vector<1x8x32xf32>
    tpu.vector_store %arg11[%64, %c0_31, %c0_32], %67 {strides = array<i32>} : memref<8x8x32xf32, #tpu.memory_space<vmem>>, vector<1x8x32xf32>,
    %68 = arith.negf %45 : vector<8x128xf32>
    %69 = math.exp %68 : vector<8x128xf32>
    %cst_33 = arith.constant 1.000000e+00 : f32
    %70 = vector.broadcast %cst_33 : f32 to vector<8x128xf32>
    %71 = arith.addf %70, %69 : vector<8x128xf32>
    %72 = arith.divf %70, %71 : vector<8x128xf32>
    %73 = math.tanh %45 : vector<8x128xf32>
    %74 = vector.extract_strided_slice %72 {offsets = [0, 0], sizes = [8, 32], strides = [1, 1]} : vector<8x128xf32> to vector<8x32xf32>
    %c96_i32_34 = arith.constant 96 : i32
    %75 = tpu.dynamic_rotate %72 by %c96_i32_34 dim 1 : vector<8x128xf32>, i32 -> vector<8x128xf32>
    %76 = vector.extract_strided_slice %75 {offsets = [0, 0], sizes = [8, 32], strides = [1, 1]} : vector<8x128xf32> to vector<8x32xf32>
    %c64_i32_35 = arith.constant 64 : i32
    %77 = tpu.dynamic_rotate %73 by %c64_i32_35 dim 1 : vector<8x128xf32>, i32 -> vector<8x128xf32>
    %78 = vector.extract_strided_slice %77 {offsets = [0, 0], sizes = [8, 32], strides = [1, 1]} : vector<8x128xf32> to vector<8x32xf32>
    %c32_i32_36 = arith.constant 32 : i32
    %79 = tpu.dynamic_rotate %72 by %c32_i32_36 dim 1 : vector<8x128xf32>, i32 -> vector<8x128xf32>
    %80 = vector.extract_strided_slice %79 {offsets = [0, 0], sizes = [8, 32], strides = [1, 1]} : vector<8x128xf32> to vector<8x32xf32>
    %81 = arith.mulf %76, %33 : vector<8x32xf32>
    %82 = arith.mulf %74, %78 : vector<8x32xf32>
    %83 = arith.addf %81, %82 : vector<8x32xf32>
    %84 = math.tanh %83 : vector<8x32xf32>
    %85 = arith.mulf %80, %84 : vector<8x32xf32>
    %c1_i32_37 = arith.constant 1 : i32
    %cst_38 = arith.constant dense<0.000000e+00> : vector<8x128xf32>
    %86 = tpu.matmul %85, %10, %cst_38 {dimension_numbers = #tpu.dot_dimension_numbers<[1], [0], [0], [1], [0, 0, 1, 1], [], []>} : vector<8x32xf32>, vector<32x128xf32>, vector<8x128xf32> -> vector<8x128xf32>
    %cst_39 = arith.constant dense<0.000000e+00> : vector<8x128xf32>
    %87 = tpu.matmul %63, %11, %cst_39 {dimension_numbers = #tpu.dot_dimension_numbers<[1], [0], [0], [1], [0, 0, 1, 1], [], []>} : vector<8x32xf32>, vector<32x128xf32>, vector<8x128xf32> -> vector<8x128xf32>
    %88 = arith.addf %86, %87 : vector<8x128xf32>
    %89 = arith.addf %88, %14 : vector<8x128xf32>
    %c1_i32_40 = arith.constant 1 : i32
    %90 = arith.addi %c1_i32_37, %c1_i32_40 : i32
    %91 = arith.index_cast %90 : i32 to index
    %c0_41 = arith.constant 0 : index
    %c0_42 = arith.constant 0 : index
    %92 = vector.load %arg10[%91, %c0_41, %c0_42] : memref<8x8x128xf32, #tpu.memory_space<vmem>>, vector<1x8x128xf32>
    %93 = vector.shape_cast %92 : vector<1x8x128xf32> to vector<8x128xf32>
    %cst_43 = arith.constant dense<0.000000e+00> : vector<8x128xf32>
    %94 = tpu.matmul %85, %9, %cst_43 {dimension_numbers = #tpu.dot_dimension_numbers<[1], [0], [0], [1], [0, 0, 1, 1], [], []>} : vector<8x32xf32>, vector<32x128xf32>, vector<8x128xf32> -> vector<8x128xf32>
    %95 = arith.addf %93, %94 : vector<8x128xf32>
    %96 = arith.negf %89 : vector<8x128xf32>
    %97 = math.exp %96 : vector<8x128xf32>
    %cst_44 = arith.constant 1.000000e+00 : f32
    %98 = vector.broadcast %cst_44 : f32 to vector<8x128xf32>
    %99 = arith.addf %98, %97 : vector<8x128xf32>
    %100 = arith.divf %98, %99 : vector<8x128xf32>
    %101 = math.tanh %89 : vector<8x128xf32>
    %102 = vector.extract_strided_slice %100 {offsets = [0, 0], sizes = [8, 32], strides = [1, 1]} : vector<8x128xf32> to vector<8x32xf32>
    %c96_i32_45 = arith.constant 96 : i32
    %103 = tpu.dynamic_rotate %100 by %c96_i32_45 dim 1 : vector<8x128xf32>, i32 -> vector<8x128xf32>
    %104 = vector.extract_strided_slice %103 {offsets = [0, 0], sizes = [8, 32], strides = [1, 1]} : vector<8x128xf32> to vector<8x32xf32>
    %c64_i32_46 = arith.constant 64 : i32
    %105 = tpu.dynamic_rotate %101 by %c64_i32_46 dim 1 : vector<8x128xf32>, i32 -> vector<8x128xf32>
    %106 = vector.extract_strided_slice %105 {offsets = [0, 0], sizes = [8, 32], strides = [1, 1]} : vector<8x128xf32> to vector<8x32xf32>
    %c32_i32_47 = arith.constant 32 : i32
    %107 = tpu.dynamic_rotate %100 by %c32_i32_47 dim 1 : vector<8x128xf32>, i32 -> vector<8x128xf32>
    %108 = vector.extract_strided_slice %107 {offsets = [0, 0], sizes = [8, 32], strides = [1, 1]} : vector<8x128xf32> to vector<8x32xf32>
    %109 = arith.mulf %104, %61 : vector<8x32xf32>
    %110 = arith.mulf %102, %106 : vector<8x32xf32>
    %111 = arith.addf %109, %110 : vector<8x32xf32>
    %112 = math.tanh %111 : vector<8x32xf32>
    %113 = arith.mulf %108, %112 : vector<8x32xf32>
    %114 = arith.index_cast %c1_i32_37 : i32 to index
    %c0_48 = arith.constant 0 : index
    %c0_49 = arith.constant 0 : index
    %115 = vector.load %arg11[%114, %c0_48, %c0_49] : memref<8x8x32xf32, #tpu.memory_space<vmem>>, vector<1x8x32xf32>
    %116 = vector.shape_cast %115 : vector<1x8x32xf32> to vector<8x32xf32>
    %117 = vector.shape_cast %113 : vector<8x32xf32> to vector<1x8x32xf32>
    tpu.vector_store %arg11[%114, %c0_48, %c0_49], %117 {strides = array<i32>} : memref<8x8x32xf32, #tpu.memory_space<vmem>>, vector<1x8x32xf32>,
    %118 = arith.negf %95 : vector<8x128xf32>
    %119 = math.exp %118 : vector<8x128xf32>
    %cst_50 = arith.constant 1.000000e+00 : f32
    %120 = vector.broadcast %cst_50 : f32 to vector<8x128xf32>
    %121 = arith.addf %120, %119 : vector<8x128xf32>
    %122 = arith.divf %120, %121 : vector<8x128xf32>
    %123 = math.tanh %95 : vector<8x128xf32>
    %124 = vector.extract_strided_slice %122 {offsets = [0, 0], sizes = [8, 32], strides = [1, 1]} : vector<8x128xf32> to vector<8x32xf32>
    %c96_i32_51 = arith.constant 96 : i32
    %125 = tpu.dynamic_rotate %122 by %c96_i32_51 dim 1 : vector<8x128xf32>, i32 -> vector<8x128xf32>
    %126 = vector.extract_strided_slice %125 {offsets = [0, 0], sizes = [8, 32], strides = [1, 1]} : vector<8x128xf32> to vector<8x32xf32>
    %c64_i32_52 = arith.constant 64 : i32
    %127 = tpu.dynamic_rotate %123 by %c64_i32_52 dim 1 : vector<8x128xf32>, i32 -> vector<8x128xf32>
    %128 = vector.extract_strided_slice %127 {offsets = [0, 0], sizes = [8, 32], strides = [1, 1]} : vector<8x128xf32> to vector<8x32xf32>
    %c32_i32_53 = arith.constant 32 : i32
    %129 = tpu.dynamic_rotate %122 by %c32_i32_53 dim 1 : vector<8x128xf32>, i32 -> vector<8x128xf32>
    %130 = vector.extract_strided_slice %129 {offsets = [0, 0], sizes = [8, 32], strides = [1, 1]} : vector<8x128xf32> to vector<8x32xf32>
    %131 = arith.mulf %126, %83 : vector<8x32xf32>
    %132 = arith.mulf %124, %128 : vector<8x32xf32>
    %133 = arith.addf %131, %132 : vector<8x32xf32>
    %134 = math.tanh %133 : vector<8x32xf32>
    %135 = arith.mulf %130, %134 : vector<8x32xf32>
    %c2_i32 = arith.constant 2 : i32
    %cst_54 = arith.constant dense<0.000000e+00> : vector<8x128xf32>
    %136 = tpu.matmul %135, %10, %cst_54 {dimension_numbers = #tpu.dot_dimension_numbers<[1], [0], [0], [1], [0, 0, 1, 1], [], []>} : vector<8x32xf32>, vector<32x128xf32>, vector<8x128xf32> -> vector<8x128xf32>
    %cst_55 = arith.constant dense<0.000000e+00> : vector<8x128xf32>
    %137 = tpu.matmul %113, %11, %cst_55 {dimension_numbers = #tpu.dot_dimension_numbers<[1], [0], [0], [1], [0, 0, 1, 1], [], []>} : vector<8x32xf32>, vector<32x128xf32>, vector<8x128xf32> -> vector<8x128xf32>
    %138 = arith.addf %136, %137 : vector<8x128xf32>
    %139 = arith.addf %138, %14 : vector<8x128xf32>
    %c1_i32_56 = arith.constant 1 : i32
    %140 = arith.addi %c2_i32, %c1_i32_56 : i32
    %141 = arith.index_cast %140 : i32 to index
    %c0_57 = arith.constant 0 : index
    %c0_58 = arith.constant 0 : index
    %142 = vector.load %arg10[%141, %c0_57, %c0_58] : memref<8x8x128xf32, #tpu.memory_space<vmem>>, vector<1x8x128xf32>
    %143 = vector.shape_cast %142 : vector<1x8x128xf32> to vector<8x128xf32>
    %cst_59 = arith.constant dense<0.000000e+00> : vector<8x128xf32>
    %144 = tpu.matmul %135, %9, %cst_59 {dimension_numbers = #tpu.dot_dimension_numbers<[1], [0], [0], [1], [0, 0, 1, 1], [], []>} : vector<8x32xf32>, vector<32x128xf32>, vector<8x128xf32> -> vector<8x128xf32>
    %145 = arith.addf %143, %144 : vector<8x128xf32>
    %146 = arith.negf %139 : vector<8x128xf32>
    %147 = math.exp %146 : vector<8x128xf32>
    %cst_60 = arith.constant 1.000000e+00 : f32
    %148 = vector.broadcast %cst_60 : f32 to vector<8x128xf32>
    %149 = arith.addf %148, %147 : vector<8x128xf32>
    %150 = arith.divf %148, %149 : vector<8x128xf32>
    %151 = math.tanh %139 : vector<8x128xf32>
    %152 = vector.extract_strided_slice %150 {offsets = [0, 0], sizes = [8, 32], strides = [1, 1]} : vector<8x128xf32> to vector<8x32xf32>
    %c96_i32_61 = arith.constant 96 : i32
    %153 = tpu.dynamic_rotate %150 by %c96_i32_61 dim 1 : vector<8x128xf32>, i32 -> vector<8x128xf32>
    %154 = vector.extract_strided_slice %153 {offsets = [0, 0], sizes = [8, 32], strides = [1, 1]} : vector<8x128xf32> to vector<8x32xf32>
    %c64_i32_62 = arith.constant 64 : i32
    %155 = tpu.dynamic_rotate %151 by %c64_i32_62 dim 1 : vector<8x128xf32>, i32 -> vector<8x128xf32>
    %156 = vector.extract_strided_slice %155 {offsets = [0, 0], sizes = [8, 32], strides = [1, 1]} : vector<8x128xf32> to vector<8x32xf32>
    %c32_i32_63 = arith.constant 32 : i32
    %157 = tpu.dynamic_rotate %150 by %c32_i32_63 dim 1 : vector<8x128xf32>, i32 -> vector<8x128xf32>
    %158 = vector.extract_strided_slice %157 {offsets = [0, 0], sizes = [8, 32], strides = [1, 1]} : vector<8x128xf32> to vector<8x32xf32>
    %159 = arith.mulf %154, %111 : vector<8x32xf32>
    %160 = arith.mulf %152, %156 : vector<8x32xf32>
    %161 = arith.addf %159, %160 : vector<8x32xf32>
    %162 = math.tanh %161 : vector<8x32xf32>
    %163 = arith.mulf %158, %162 : vector<8x32xf32>
    %164 = arith.index_cast %c2_i32 : i32 to index
    %c0_64 = arith.constant 0 : index
    %c0_65 = arith.constant 0 : index
    %165 = vector.load %arg11[%164, %c0_64, %c0_65] : memref<8x8x32xf32, #tpu.memory_space<vmem>>, vector<1x8x32xf32>
    %166 = vector.shape_cast %165 : vector<1x8x32xf32> to vector<8x32xf32>
    %167 = vector.shape_cast %163 : vector<8x32xf32> to vector<1x8x32xf32>
    tpu.vector_store %arg11[%164, %c0_64, %c0_65], %167 {strides = array<i32>} : memref<8x8x32xf32, #tpu.memory_space<vmem>>, vector<1x8x32xf32>,
    %168 = arith.negf %145 : vector<8x128xf32>
    %169 = math.exp %168 : vector<8x128xf32>
    %cst_66 = arith.constant 1.000000e+00 : f32
    %170 = vector.broadcast %cst_66 : f32 to vector<8x128xf32>
    %171 = arith.addf %170, %169 : vector<8x128xf32>
    %172 = arith.divf %170, %171 : vector<8x128xf32>
    %173 = math.tanh %145 : vector<8x128xf32>
    %174 = vector.extract_strided_slice %172 {offsets = [0, 0], sizes = [8, 32], strides = [1, 1]} : vector<8x128xf32> to vector<8x32xf32>
    %c96_i32_67 = arith.constant 96 : i32
    %175 = tpu.dynamic_rotate %172 by %c96_i32_67 dim 1 : vector<8x128xf32>, i32 -> vector<8x128xf32>
    %176 = vector.extract_strided_slice %175 {offsets = [0, 0], sizes = [8, 32], strides = [1, 1]} : vector<8x128xf32> to vector<8x32xf32>
    %c64_i32_68 = arith.constant 64 : i32
    %177 = tpu.dynamic_rotate %173 by %c64_i32_68 dim 1 : vector<8x128xf32>, i32 -> vector<8x128xf32>
    %178 = vector.extract_strided_slice %177 {offsets = [0, 0], sizes = [8, 32], strides = [1, 1]} : vector<8x128xf32> to vector<8x32xf32>
    %c32_i32_69 = arith.constant 32 : i32
    %179 = tpu.dynamic_rotate %172 by %c32_i32_69 dim 1 : vector<8x128xf32>, i32 -> vector<8x128xf32>
    %180 = vector.extract_strided_slice %179 {offsets = [0, 0], sizes = [8, 32], strides = [1, 1]} : vector<8x128xf32> to vector<8x32xf32>
    %181 = arith.mulf %176, %133 : vector<8x32xf32>
    %182 = arith.mulf %174, %178 : vector<8x32xf32>
    %183 = arith.addf %181, %182 : vector<8x32xf32>
    %184 = math.tanh %183 : vector<8x32xf32>
    %185 = arith.mulf %180, %184 : vector<8x32xf32>
    %c3_i32 = arith.constant 3 : i32
    %cst_70 = arith.constant dense<0.000000e+00> : vector<8x128xf32>
    %186 = tpu.matmul %185, %10, %cst_70 {dimension_numbers = #tpu.dot_dimension_numbers<[1], [0], [0], [1], [0, 0, 1, 1], [], []>} : vector<8x32xf32>, vector<32x128xf32>, vector<8x128xf32> -> vector<8x128xf32>
    %cst_71 = arith.constant dense<0.000000e+00> : vector<8x128xf32>
    %187 = tpu.matmul %163, %11, %cst_71 {dimension_numbers = #tpu.dot_dimension_numbers<[1], [0], [0], [1], [0, 0, 1, 1], [], []>} : vector<8x32xf32>, vector<32x128xf32>, vector<8x128xf32> -> vector<8x128xf32>
    %188 = arith.addf %186, %187 : vector<8x128xf32>
    %189 = arith.addf %188, %14 : vector<8x128xf32>
    %c1_i32_72 = arith.constant 1 : i32
    %190 = arith.addi %c3_i32, %c1_i32_72 : i32
    %191 = arith.index_cast %190 : i32 to index
    %c0_73 = arith.constant 0 : index
    %c0_74 = arith.constant 0 : index
    %192 = vector.load %arg10[%191, %c0_73, %c0_74] : memref<8x8x128xf32, #tpu.memory_space<vmem>>, vector<1x8x128xf32>
    %193 = vector.shape_cast %192 : vector<1x8x128xf32> to vector<8x128xf32>
    %cst_75 = arith.constant dense<0.000000e+00> : vector<8x128xf32>
    %194 = tpu.matmul %185, %9, %cst_75 {dimension_numbers = #tpu.dot_dimension_numbers<[1], [0], [0], [1], [0, 0, 1, 1], [], []>} : vector<8x32xf32>, vector<32x128xf32>, vector<8x128xf32> -> vector<8x128xf32>
    %195 = arith.addf %193, %194 : vector<8x128xf32>
    %196 = arith.negf %189 : vector<8x128xf32>
    %197 = math.exp %196 : vector<8x128xf32>
    %cst_76 = arith.constant 1.000000e+00 : f32
    %198 = vector.broadcast %cst_76 : f32 to vector<8x128xf32>
    %199 = arith.addf %198, %197 : vector<8x128xf32>
    %200 = arith.divf %198, %199 : vector<8x128xf32>
    %201 = math.tanh %189 : vector<8x128xf32>
    %202 = vector.extract_strided_slice %200 {offsets = [0, 0], sizes = [8, 32], strides = [1, 1]} : vector<8x128xf32> to vector<8x32xf32>
    %c96_i32_77 = arith.constant 96 : i32
    %203 = tpu.dynamic_rotate %200 by %c96_i32_77 dim 1 : vector<8x128xf32>, i32 -> vector<8x128xf32>
    %204 = vector.extract_strided_slice %203 {offsets = [0, 0], sizes = [8, 32], strides = [1, 1]} : vector<8x128xf32> to vector<8x32xf32>
    %c64_i32_78 = arith.constant 64 : i32
    %205 = tpu.dynamic_rotate %201 by %c64_i32_78 dim 1 : vector<8x128xf32>, i32 -> vector<8x128xf32>
    %206 = vector.extract_strided_slice %205 {offsets = [0, 0], sizes = [8, 32], strides = [1, 1]} : vector<8x128xf32> to vector<8x32xf32>
    %c32_i32_79 = arith.constant 32 : i32
    %207 = tpu.dynamic_rotate %200 by %c32_i32_79 dim 1 : vector<8x128xf32>, i32 -> vector<8x128xf32>
    %208 = vector.extract_strided_slice %207 {offsets = [0, 0], sizes = [8, 32], strides = [1, 1]} : vector<8x128xf32> to vector<8x32xf32>
    %209 = arith.mulf %204, %161 : vector<8x32xf32>
    %210 = arith.mulf %202, %206 : vector<8x32xf32>
    %211 = arith.addf %209, %210 : vector<8x32xf32>
    %212 = math.tanh %211 : vector<8x32xf32>
    %213 = arith.mulf %208, %212 : vector<8x32xf32>
    %214 = arith.index_cast %c3_i32 : i32 to index
    %c0_80 = arith.constant 0 : index
    %c0_81 = arith.constant 0 : index
    %215 = vector.load %arg11[%214, %c0_80, %c0_81] : memref<8x8x32xf32, #tpu.memory_space<vmem>>, vector<1x8x32xf32>
    %216 = vector.shape_cast %215 : vector<1x8x32xf32> to vector<8x32xf32>
    %217 = vector.shape_cast %213 : vector<8x32xf32> to vector<1x8x32xf32>
    tpu.vector_store %arg11[%214, %c0_80, %c0_81], %217 {strides = array<i32>} : memref<8x8x32xf32, #tpu.memory_space<vmem>>, vector<1x8x32xf32>,
    %218 = arith.negf %195 : vector<8x128xf32>
    %219 = math.exp %218 : vector<8x128xf32>
    %cst_82 = arith.constant 1.000000e+00 : f32
    %220 = vector.broadcast %cst_82 : f32 to vector<8x128xf32>
    %221 = arith.addf %220, %219 : vector<8x128xf32>
    %222 = arith.divf %220, %221 : vector<8x128xf32>
    %223 = math.tanh %195 : vector<8x128xf32>
    %224 = vector.extract_strided_slice %222 {offsets = [0, 0], sizes = [8, 32], strides = [1, 1]} : vector<8x128xf32> to vector<8x32xf32>
    %c96_i32_83 = arith.constant 96 : i32
    %225 = tpu.dynamic_rotate %222 by %c96_i32_83 dim 1 : vector<8x128xf32>, i32 -> vector<8x128xf32>
    %226 = vector.extract_strided_slice %225 {offsets = [0, 0], sizes = [8, 32], strides = [1, 1]} : vector<8x128xf32> to vector<8x32xf32>
    %c64_i32_84 = arith.constant 64 : i32
    %227 = tpu.dynamic_rotate %223 by %c64_i32_84 dim 1 : vector<8x128xf32>, i32 -> vector<8x128xf32>
    %228 = vector.extract_strided_slice %227 {offsets = [0, 0], sizes = [8, 32], strides = [1, 1]} : vector<8x128xf32> to vector<8x32xf32>
    %c32_i32_85 = arith.constant 32 : i32
    %229 = tpu.dynamic_rotate %222 by %c32_i32_85 dim 1 : vector<8x128xf32>, i32 -> vector<8x128xf32>
    %230 = vector.extract_strided_slice %229 {offsets = [0, 0], sizes = [8, 32], strides = [1, 1]} : vector<8x128xf32> to vector<8x32xf32>
    %231 = arith.mulf %226, %183 : vector<8x32xf32>
    %232 = arith.mulf %224, %228 : vector<8x32xf32>
    %233 = arith.addf %231, %232 : vector<8x32xf32>
    %234 = math.tanh %233 : vector<8x32xf32>
    %235 = arith.mulf %230, %234 : vector<8x32xf32>
    %c4_i32 = arith.constant 4 : i32
    %cst_86 = arith.constant dense<0.000000e+00> : vector<8x128xf32>
    %236 = tpu.matmul %235, %10, %cst_86 {dimension_numbers = #tpu.dot_dimension_numbers<[1], [0], [0], [1], [0, 0, 1, 1], [], []>} : vector<8x32xf32>, vector<32x128xf32>, vector<8x128xf32> -> vector<8x128xf32>
    %cst_87 = arith.constant dense<0.000000e+00> : vector<8x128xf32>
    %237 = tpu.matmul %213, %11, %cst_87 {dimension_numbers = #tpu.dot_dimension_numbers<[1], [0], [0], [1], [0, 0, 1, 1], [], []>} : vector<8x32xf32>, vector<32x128xf32>, vector<8x128xf32> -> vector<8x128xf32>
    %238 = arith.addf %236, %237 : vector<8x128xf32>
    %239 = arith.addf %238, %14 : vector<8x128xf32>
    %c1_i32_88 = arith.constant 1 : i32
    %240 = arith.addi %c4_i32, %c1_i32_88 : i32
    %241 = arith.index_cast %240 : i32 to index
    %c0_89 = arith.constant 0 : index
    %c0_90 = arith.constant 0 : index
    %242 = vector.load %arg10[%241, %c0_89, %c0_90] : memref<8x8x128xf32, #tpu.memory_space<vmem>>, vector<1x8x128xf32>
    %243 = vector.shape_cast %242 : vector<1x8x128xf32> to vector<8x128xf32>
    %cst_91 = arith.constant dense<0.000000e+00> : vector<8x128xf32>
    %244 = tpu.matmul %235, %9, %cst_91 {dimension_numbers = #tpu.dot_dimension_numbers<[1], [0], [0], [1], [0, 0, 1, 1], [], []>} : vector<8x32xf32>, vector<32x128xf32>, vector<8x128xf32> -> vector<8x128xf32>
    %245 = arith.addf %243, %244 : vector<8x128xf32>
    %246 = arith.negf %239 : vector<8x128xf32>
    %247 = math.exp %246 : vector<8x128xf32>
    %cst_92 = arith.constant 1.000000e+00 : f32
    %248 = vector.broadcast %cst_92 : f32 to vector<8x128xf32>
    %249 = arith.addf %248, %247 : vector<8x128xf32>
    %250 = arith.divf %248, %249 : vector<8x128xf32>
    %251 = math.tanh %239 : vector<8x128xf32>
    %252 = vector.extract_strided_slice %250 {offsets = [0, 0], sizes = [8, 32], strides = [1, 1]} : vector<8x128xf32> to vector<8x32xf32>
    %c96_i32_93 = arith.constant 96 : i32
    %253 = tpu.dynamic_rotate %250 by %c96_i32_93 dim 1 : vector<8x128xf32>, i32 -> vector<8x128xf32>
    %254 = vector.extract_strided_slice %253 {offsets = [0, 0], sizes = [8, 32], strides = [1, 1]} : vector<8x128xf32> to vector<8x32xf32>
    %c64_i32_94 = arith.constant 64 : i32
    %255 = tpu.dynamic_rotate %251 by %c64_i32_94 dim 1 : vector<8x128xf32>, i32 -> vector<8x128xf32>
    %256 = vector.extract_strided_slice %255 {offsets = [0, 0], sizes = [8, 32], strides = [1, 1]} : vector<8x128xf32> to vector<8x32xf32>
    %c32_i32_95 = arith.constant 32 : i32
    %257 = tpu.dynamic_rotate %250 by %c32_i32_95 dim 1 : vector<8x128xf32>, i32 -> vector<8x128xf32>
    %258 = vector.extract_strided_slice %257 {offsets = [0, 0], sizes = [8, 32], strides = [1, 1]} : vector<8x128xf32> to vector<8x32xf32>
    %259 = arith.mulf %254, %211 : vector<8x32xf32>
    %260 = arith.mulf %252, %256 : vector<8x32xf32>
    %261 = arith.addf %259, %260 : vector<8x32xf32>
    %262 = math.tanh %261 : vector<8x32xf32>
    %263 = arith.mulf %258, %262 : vector<8x32xf32>
    %264 = arith.index_cast %c4_i32 : i32 to index
    %c0_96 = arith.constant 0 : index
    %c0_97 = arith.constant 0 : index
    %265 = vector.load %arg11[%264, %c0_96, %c0_97] : memref<8x8x32xf32, #tpu.memory_space<vmem>>, vector<1x8x32xf32>
    %266 = vector.shape_cast %265 : vector<1x8x32xf32> to vector<8x32xf32>
    %267 = vector.shape_cast %263 : vector<8x32xf32> to vector<1x8x32xf32>
    tpu.vector_store %arg11[%264, %c0_96, %c0_97], %267 {strides = array<i32>} : memref<8x8x32xf32, #tpu.memory_space<vmem>>, vector<1x8x32xf32>,
    %268 = arith.negf %245 : vector<8x128xf32>
    %269 = math.exp %268 : vector<8x128xf32>
    %cst_98 = arith.constant 1.000000e+00 : f32
    %270 = vector.broadcast %cst_98 : f32 to vector<8x128xf32>
    %271 = arith.addf %270, %269 : vector<8x128xf32>
    %272 = arith.divf %270, %271 : vector<8x128xf32>
    %273 = math.tanh %245 : vector<8x128xf32>
    %274 = vector.extract_strided_slice %272 {offsets = [0, 0], sizes = [8, 32], strides = [1, 1]} : vector<8x128xf32> to vector<8x32xf32>
    %c96_i32_99 = arith.constant 96 : i32
    %275 = tpu.dynamic_rotate %272 by %c96_i32_99 dim 1 : vector<8x128xf32>, i32 -> vector<8x128xf32>
    %276 = vector.extract_strided_slice %275 {offsets = [0, 0], sizes = [8, 32], strides = [1, 1]} : vector<8x128xf32> to vector<8x32xf32>
    %c64_i32_100 = arith.constant 64 : i32
    %277 = tpu.dynamic_rotate %273 by %c64_i32_100 dim 1 : vector<8x128xf32>, i32 -> vector<8x128xf32>
    %278 = vector.extract_strided_slice %277 {offsets = [0, 0], sizes = [8, 32], strides = [1, 1]} : vector<8x128xf32> to vector<8x32xf32>
    %c32_i32_101 = arith.constant 32 : i32
    %279 = tpu.dynamic_rotate %272 by %c32_i32_101 dim 1 : vector<8x128xf32>, i32 -> vector<8x128xf32>
    %280 = vector.extract_strided_slice %279 {offsets = [0, 0], sizes = [8, 32], strides = [1, 1]} : vector<8x128xf32> to vector<8x32xf32>
    %281 = arith.mulf %276, %233 : vector<8x32xf32>
    %282 = arith.mulf %274, %278 : vector<8x32xf32>
    %283 = arith.addf %281, %282 : vector<8x32xf32>
    %284 = math.tanh %283 : vector<8x32xf32>
    %285 = arith.mulf %280, %284 : vector<8x32xf32>
    %c5_i32 = arith.constant 5 : i32
    %cst_102 = arith.constant dense<0.000000e+00> : vector<8x128xf32>
    %286 = tpu.matmul %285, %10, %cst_102 {dimension_numbers = #tpu.dot_dimension_numbers<[1], [0], [0], [1], [0, 0, 1, 1], [], []>} : vector<8x32xf32>, vector<32x128xf32>, vector<8x128xf32> -> vector<8x128xf32>
    %cst_103 = arith.constant dense<0.000000e+00> : vector<8x128xf32>
    %287 = tpu.matmul %263, %11, %cst_103 {dimension_numbers = #tpu.dot_dimension_numbers<[1], [0], [0], [1], [0, 0, 1, 1], [], []>} : vector<8x32xf32>, vector<32x128xf32>, vector<8x128xf32> -> vector<8x128xf32>
    %288 = arith.addf %286, %287 : vector<8x128xf32>
    %289 = arith.addf %288, %14 : vector<8x128xf32>
    %c1_i32_104 = arith.constant 1 : i32
    %290 = arith.addi %c5_i32, %c1_i32_104 : i32
    %291 = arith.index_cast %290 : i32 to index
    %c0_105 = arith.constant 0 : index
    %c0_106 = arith.constant 0 : index
    %292 = vector.load %arg10[%291, %c0_105, %c0_106] : memref<8x8x128xf32, #tpu.memory_space<vmem>>, vector<1x8x128xf32>
    %293 = vector.shape_cast %292 : vector<1x8x128xf32> to vector<8x128xf32>
    %cst_107 = arith.constant dense<0.000000e+00> : vector<8x128xf32>
    %294 = tpu.matmul %285, %9, %cst_107 {dimension_numbers = #tpu.dot_dimension_numbers<[1], [0], [0], [1], [0, 0, 1, 1], [], []>} : vector<8x32xf32>, vector<32x128xf32>, vector<8x128xf32> -> vector<8x128xf32>
    %295 = arith.addf %293, %294 : vector<8x128xf32>
    %296 = arith.negf %289 : vector<8x128xf32>
    %297 = math.exp %296 : vector<8x128xf32>
    %cst_108 = arith.constant 1.000000e+00 : f32
    %298 = vector.broadcast %cst_108 : f32 to vector<8x128xf32>
    %299 = arith.addf %298, %297 : vector<8x128xf32>
    %300 = arith.divf %298, %299 : vector<8x128xf32>
    %301 = math.tanh %289 : vector<8x128xf32>
    %302 = vector.extract_strided_slice %300 {offsets = [0, 0], sizes = [8, 32], strides = [1, 1]} : vector<8x128xf32> to vector<8x32xf32>
    %c96_i32_109 = arith.constant 96 : i32
    %303 = tpu.dynamic_rotate %300 by %c96_i32_109 dim 1 : vector<8x128xf32>, i32 -> vector<8x128xf32>
    %304 = vector.extract_strided_slice %303 {offsets = [0, 0], sizes = [8, 32], strides = [1, 1]} : vector<8x128xf32> to vector<8x32xf32>
    %c64_i32_110 = arith.constant 64 : i32
    %305 = tpu.dynamic_rotate %301 by %c64_i32_110 dim 1 : vector<8x128xf32>, i32 -> vector<8x128xf32>
    %306 = vector.extract_strided_slice %305 {offsets = [0, 0], sizes = [8, 32], strides = [1, 1]} : vector<8x128xf32> to vector<8x32xf32>
    %c32_i32_111 = arith.constant 32 : i32
    %307 = tpu.dynamic_rotate %300 by %c32_i32_111 dim 1 : vector<8x128xf32>, i32 -> vector<8x128xf32>
    %308 = vector.extract_strided_slice %307 {offsets = [0, 0], sizes = [8, 32], strides = [1, 1]} : vector<8x128xf32> to vector<8x32xf32>
    %309 = arith.mulf %304, %261 : vector<8x32xf32>
    %310 = arith.mulf %302, %306 : vector<8x32xf32>
    %311 = arith.addf %309, %310 : vector<8x32xf32>
    %312 = math.tanh %311 : vector<8x32xf32>
    %313 = arith.mulf %308, %312 : vector<8x32xf32>
    %314 = arith.index_cast %c5_i32 : i32 to index
    %c0_112 = arith.constant 0 : index
    %c0_113 = arith.constant 0 : index
    %315 = vector.load %arg11[%314, %c0_112, %c0_113] : memref<8x8x32xf32, #tpu.memory_space<vmem>>, vector<1x8x32xf32>
    %316 = vector.shape_cast %315 : vector<1x8x32xf32> to vector<8x32xf32>
    %317 = vector.shape_cast %313 : vector<8x32xf32> to vector<1x8x32xf32>
    tpu.vector_store %arg11[%314, %c0_112, %c0_113], %317 {strides = array<i32>} : memref<8x8x32xf32, #tpu.memory_space<vmem>>, vector<1x8x32xf32>,
    %318 = arith.negf %295 : vector<8x128xf32>
    %319 = math.exp %318 : vector<8x128xf32>
    %cst_114 = arith.constant 1.000000e+00 : f32
    %320 = vector.broadcast %cst_114 : f32 to vector<8x128xf32>
    %321 = arith.addf %320, %319 : vector<8x128xf32>
    %322 = arith.divf %320, %321 : vector<8x128xf32>
    %323 = math.tanh %295 : vector<8x128xf32>
    %324 = vector.extract_strided_slice %322 {offsets = [0, 0], sizes = [8, 32], strides = [1, 1]} : vector<8x128xf32> to vector<8x32xf32>
    %c96_i32_115 = arith.constant 96 : i32
    %325 = tpu.dynamic_rotate %322 by %c96_i32_115 dim 1 : vector<8x128xf32>, i32 -> vector<8x128xf32>
    %326 = vector.extract_strided_slice %325 {offsets = [0, 0], sizes = [8, 32], strides = [1, 1]} : vector<8x128xf32> to vector<8x32xf32>
    %c64_i32_116 = arith.constant 64 : i32
    %327 = tpu.dynamic_rotate %323 by %c64_i32_116 dim 1 : vector<8x128xf32>, i32 -> vector<8x128xf32>
    %328 = vector.extract_strided_slice %327 {offsets = [0, 0], sizes = [8, 32], strides = [1, 1]} : vector<8x128xf32> to vector<8x32xf32>
    %c32_i32_117 = arith.constant 32 : i32
    %329 = tpu.dynamic_rotate %322 by %c32_i32_117 dim 1 : vector<8x128xf32>, i32 -> vector<8x128xf32>
    %330 = vector.extract_strided_slice %329 {offsets = [0, 0], sizes = [8, 32], strides = [1, 1]} : vector<8x128xf32> to vector<8x32xf32>
    %331 = arith.mulf %326, %283 : vector<8x32xf32>
    %332 = arith.mulf %324, %328 : vector<8x32xf32>
    %333 = arith.addf %331, %332 : vector<8x32xf32>
    %334 = math.tanh %333 : vector<8x32xf32>
    %335 = arith.mulf %330, %334 : vector<8x32xf32>
    %c6_i32 = arith.constant 6 : i32
    %cst_118 = arith.constant dense<0.000000e+00> : vector<8x128xf32>
    %336 = tpu.matmul %335, %10, %cst_118 {dimension_numbers = #tpu.dot_dimension_numbers<[1], [0], [0], [1], [0, 0, 1, 1], [], []>} : vector<8x32xf32>, vector<32x128xf32>, vector<8x128xf32> -> vector<8x128xf32>
    %cst_119 = arith.constant dense<0.000000e+00> : vector<8x128xf32>
    %337 = tpu.matmul %313, %11, %cst_119 {dimension_numbers = #tpu.dot_dimension_numbers<[1], [0], [0], [1], [0, 0, 1, 1], [], []>} : vector<8x32xf32>, vector<32x128xf32>, vector<8x128xf32> -> vector<8x128xf32>
    %338 = arith.addf %336, %337 : vector<8x128xf32>
    %339 = arith.addf %338, %14 : vector<8x128xf32>
    %c1_i32_120 = arith.constant 1 : i32
    %340 = arith.addi %c6_i32, %c1_i32_120 : i32
    %341 = arith.index_cast %340 : i32 to index
    %c0_121 = arith.constant 0 : index
    %c0_122 = arith.constant 0 : index
    %342 = vector.load %arg10[%341, %c0_121, %c0_122] : memref<8x8x128xf32, #tpu.memory_space<vmem>>, vector<1x8x128xf32>
    %343 = vector.shape_cast %342 : vector<1x8x128xf32> to vector<8x128xf32>
    %cst_123 = arith.constant dense<0.000000e+00> : vector<8x128xf32>
    %344 = tpu.matmul %335, %9, %cst_123 {dimension_numbers = #tpu.dot_dimension_numbers<[1], [0], [0], [1], [0, 0, 1, 1], [], []>} : vector<8x32xf32>, vector<32x128xf32>, vector<8x128xf32> -> vector<8x128xf32>
    %345 = arith.addf %343, %344 : vector<8x128xf32>
    %346 = arith.negf %339 : vector<8x128xf32>
    %347 = math.exp %346 : vector<8x128xf32>
    %cst_124 = arith.constant 1.000000e+00 : f32
    %348 = vector.broadcast %cst_124 : f32 to vector<8x128xf32>
    %349 = arith.addf %348, %347 : vector<8x128xf32>
    %350 = arith.divf %348, %349 : vector<8x128xf32>
    %351 = math.tanh %339 : vector<8x128xf32>
    %352 = vector.extract_strided_slice %350 {offsets = [0, 0], sizes = [8, 32], strides = [1, 1]} : vector<8x128xf32> to vector<8x32xf32>
    %c96_i32_125 = arith.constant 96 : i32
    %353 = tpu.dynamic_rotate %350 by %c96_i32_125 dim 1 : vector<8x128xf32>, i32 -> vector<8x128xf32>
    %354 = vector.extract_strided_slice %353 {offsets = [0, 0], sizes = [8, 32], strides = [1, 1]} : vector<8x128xf32> to vector<8x32xf32>
    %c64_i32_126 = arith.constant 64 : i32
    %355 = tpu.dynamic_rotate %351 by %c64_i32_126 dim 1 : vector<8x128xf32>, i32 -> vector<8x128xf32>
    %356 = vector.extract_strided_slice %355 {offsets = [0, 0], sizes = [8, 32], strides = [1, 1]} : vector<8x128xf32> to vector<8x32xf32>
    %c32_i32_127 = arith.constant 32 : i32
    %357 = tpu.dynamic_rotate %350 by %c32_i32_127 dim 1 : vector<8x128xf32>, i32 -> vector<8x128xf32>
    %358 = vector.extract_strided_slice %357 {offsets = [0, 0], sizes = [8, 32], strides = [1, 1]} : vector<8x128xf32> to vector<8x32xf32>
    %359 = arith.mulf %354, %311 : vector<8x32xf32>
    %360 = arith.mulf %352, %356 : vector<8x32xf32>
    %361 = arith.addf %359, %360 : vector<8x32xf32>
    %362 = math.tanh %361 : vector<8x32xf32>
    %363 = arith.mulf %358, %362 : vector<8x32xf32>
    %364 = arith.index_cast %c6_i32 : i32 to index
    %c0_128 = arith.constant 0 : index
    %c0_129 = arith.constant 0 : index
    %365 = vector.load %arg11[%364, %c0_128, %c0_129] : memref<8x8x32xf32, #tpu.memory_space<vmem>>, vector<1x8x32xf32>
    %366 = vector.shape_cast %365 : vector<1x8x32xf32> to vector<8x32xf32>
    %367 = vector.shape_cast %363 : vector<8x32xf32> to vector<1x8x32xf32>
    tpu.vector_store %arg11[%364, %c0_128, %c0_129], %367 {strides = array<i32>} : memref<8x8x32xf32, #tpu.memory_space<vmem>>, vector<1x8x32xf32>,
    %368 = arith.negf %345 : vector<8x128xf32>
    %369 = math.exp %368 : vector<8x128xf32>
    %cst_130 = arith.constant 1.000000e+00 : f32
    %370 = vector.broadcast %cst_130 : f32 to vector<8x128xf32>
    %371 = arith.addf %370, %369 : vector<8x128xf32>
    %372 = arith.divf %370, %371 : vector<8x128xf32>
    %373 = math.tanh %345 : vector<8x128xf32>
    %374 = vector.extract_strided_slice %372 {offsets = [0, 0], sizes = [8, 32], strides = [1, 1]} : vector<8x128xf32> to vector<8x32xf32>
    %c96_i32_131 = arith.constant 96 : i32
    %375 = tpu.dynamic_rotate %372 by %c96_i32_131 dim 1 : vector<8x128xf32>, i32 -> vector<8x128xf32>
    %376 = vector.extract_strided_slice %375 {offsets = [0, 0], sizes = [8, 32], strides = [1, 1]} : vector<8x128xf32> to vector<8x32xf32>
    %c64_i32_132 = arith.constant 64 : i32
    %377 = tpu.dynamic_rotate %373 by %c64_i32_132 dim 1 : vector<8x128xf32>, i32 -> vector<8x128xf32>
    %378 = vector.extract_strided_slice %377 {offsets = [0, 0], sizes = [8, 32], strides = [1, 1]} : vector<8x128xf32> to vector<8x32xf32>
    %c32_i32_133 = arith.constant 32 : i32
    %379 = tpu.dynamic_rotate %372 by %c32_i32_133 dim 1 : vector<8x128xf32>, i32 -> vector<8x128xf32>
    %380 = vector.extract_strided_slice %379 {offsets = [0, 0], sizes = [8, 32], strides = [1, 1]} : vector<8x128xf32> to vector<8x32xf32>
    %381 = arith.mulf %376, %333 : vector<8x32xf32>
    %382 = arith.mulf %374, %378 : vector<8x32xf32>
    %383 = arith.addf %381, %382 : vector<8x32xf32>
    %384 = math.tanh %383 : vector<8x32xf32>
    %385 = arith.mulf %380, %384 : vector<8x32xf32>
    %c7_i32 = arith.constant 7 : i32
    %cst_134 = arith.constant dense<0.000000e+00> : vector<8x128xf32>
    %386 = tpu.matmul %385, %10, %cst_134 {dimension_numbers = #tpu.dot_dimension_numbers<[1], [0], [0], [1], [0, 0, 1, 1], [], []>} : vector<8x32xf32>, vector<32x128xf32>, vector<8x128xf32> -> vector<8x128xf32>
    %cst_135 = arith.constant dense<0.000000e+00> : vector<8x128xf32>
    %387 = tpu.matmul %363, %11, %cst_135 {dimension_numbers = #tpu.dot_dimension_numbers<[1], [0], [0], [1], [0, 0, 1, 1], [], []>} : vector<8x32xf32>, vector<32x128xf32>, vector<8x128xf32> -> vector<8x128xf32>
    %388 = arith.addf %386, %387 : vector<8x128xf32>
    %389 = arith.addf %388, %14 : vector<8x128xf32>
    %390 = arith.negf %389 : vector<8x128xf32>
    %391 = math.exp %390 : vector<8x128xf32>
    %cst_136 = arith.constant 1.000000e+00 : f32
    %392 = vector.broadcast %cst_136 : f32 to vector<8x128xf32>
    %393 = arith.addf %392, %391 : vector<8x128xf32>
    %394 = arith.divf %392, %393 : vector<8x128xf32>
    %395 = math.tanh %389 : vector<8x128xf32>
    %396 = vector.extract_strided_slice %394 {offsets = [0, 0], sizes = [8, 32], strides = [1, 1]} : vector<8x128xf32> to vector<8x32xf32>
    %c96_i32_137 = arith.constant 96 : i32
    %397 = tpu.dynamic_rotate %394 by %c96_i32_137 dim 1 : vector<8x128xf32>, i32 -> vector<8x128xf32>
    %398 = vector.extract_strided_slice %397 {offsets = [0, 0], sizes = [8, 32], strides = [1, 1]} : vector<8x128xf32> to vector<8x32xf32>
    %c64_i32_138 = arith.constant 64 : i32
    %399 = tpu.dynamic_rotate %395 by %c64_i32_138 dim 1 : vector<8x128xf32>, i32 -> vector<8x128xf32>
    %400 = vector.extract_strided_slice %399 {offsets = [0, 0], sizes = [8, 32], strides = [1, 1]} : vector<8x128xf32> to vector<8x32xf32>
    %c32_i32_139 = arith.constant 32 : i32
    %401 = tpu.dynamic_rotate %394 by %c32_i32_139 dim 1 : vector<8x128xf32>, i32 -> vector<8x128xf32>
    %402 = vector.extract_strided_slice %401 {offsets = [0, 0], sizes = [8, 32], strides = [1, 1]} : vector<8x128xf32> to vector<8x32xf32>
    %403 = arith.mulf %398, %361 : vector<8x32xf32>
    %404 = arith.mulf %396, %400 : vector<8x32xf32>
    %405 = arith.addf %403, %404 : vector<8x32xf32>
    %406 = math.tanh %405 : vector<8x32xf32>
    %407 = arith.mulf %402, %406 : vector<8x32xf32>
    %c7 = arith.constant 7 : index
    %c0_140 = arith.constant 0 : index
    %c0_141 = arith.constant 0 : index
    %408 = vector.load %arg11[%c7, %c0_140, %c0_141] : memref<8x8x32xf32, #tpu.memory_space<vmem>>, vector<1x8x32xf32>
    %409 = vector.shape_cast %408 : vector<1x8x32xf32> to vector<8x32xf32>
    %410 = vector.shape_cast %407 : vector<8x32xf32> to vector<1x8x32xf32>
    tpu.vector_store %arg11[%c7, %c0_140, %c0_141], %410 {strides = array<i32>} : memref<8x8x32xf32, #tpu.memory_space<vmem>>, vector<1x8x32xf32>,
    %c0_142 = arith.constant 0 : index
    %c0_143 = arith.constant 0 : index
    %c0_144 = arith.constant 0 : index
    %411 = vector.load %arg11[%c0_142, %c0_143, %c0_144] : memref<8x8x32xf32, #tpu.memory_space<vmem>>, vector<8x8x32xf32>
    %412 = vector.shape_cast %411 : vector<8x8x32xf32> to vector<64x32xf32>
    %c0_145 = arith.constant 0 : index
    %c0_146 = arith.constant 0 : index
    %413 = vector.load %arg7[%c0_145, %c0_146] : memref<32x128xf32, #tpu.memory_space<vmem>>, vector<32x128xf32>
    %cst_147 = arith.constant dense<0.000000e+00> : vector<64x128xf32>
    %414 = tpu.matmul %412, %413, %cst_147 {dimension_numbers = #tpu.dot_dimension_numbers<[1], [0], [0], [1], [0, 0, 1, 1], [], []>} : vector<64x32xf32>, vector<32x128xf32>, vector<64x128xf32> -> vector<64x128xf32>
    %c0_148 = arith.constant 0 : index
    %c0_149 = arith.constant 0 : index
    %415 = vector.load %arg8[%c0_148, %c0_149] : memref<1x128xf32, #tpu.memory_space<vmem>>, vector<1x128xf32>
    %416 = vector.broadcast %415 : vector<1x128xf32> to vector<64x128xf32>
    %417 = arith.addf %414, %416 : vector<64x128xf32>
    %c0_150 = arith.constant 0 : index
    %c0_151 = arith.constant 0 : index
    %418 = vector.load %arg9[%c0_150, %c0_151] : memref<64x128xf32, #tpu.memory_space<vmem>>, vector<64x128xf32>
    tpu.vector_store %arg9[%c0_150, %c0_151], %417 {strides = array<i32>} : memref<64x128xf32, #tpu.memory_space<vmem>>, vector<64x128xf32>,
    return
  }
}

</mosaic_0001>

<llo_original>
// kernel: tpu_custom_call.1
$region0: #{tpu_custom_call.1}
  #allocation0 [shape = 'u32[]', space=smem, size = 0x4, offset = 0x4, fixed_abs, tag = 'smem constant byte address 0x4 - core index']
  #allocation1 [shape = 'u32[72,128]{1,0:T(1,128)}', space=vmem, size = 0x9000, scoped, tag = 'internal scratch']
  #allocation2 [shape = 'f32[8,8,128]{2,1,0:T(8,128)}', space=vmem, size = 0x8000, scoped, tag = 'scratch operand']
  #allocation3 [shape = 'f32[8,8,32]{2,1,0:T(8,128)}', space=vmem, size = 0x8000, scoped, tag = 'scratch operand']
  %s0 = inlined_call_operand.hbm [shape: f32[8,8,16], index: 0, kind: input, shape index: {}]
  %s1 = inlined_call_operand.hbm [shape: f32[16,128], index: 1, kind: input, shape index: {}]
  %s2 = inlined_call_operand.hbm [shape: f32[32,128], index: 2, kind: input, shape index: {}]
  %s3 = inlined_call_operand.vmem [shape: f32[1,128], index: 3, kind: input, shape index: {}]
  %s4 = inlined_call_operand.hbm [shape: f32[32,128], index: 4, kind: input, shape index: {}]
  %s5 = inlined_call_operand.hbm [shape: f32[32,128], index: 5, kind: input, shape index: {}]
  %s6 = inlined_call_operand.vmem [shape: f32[1,128], index: 6, kind: input, shape index: {}]
  %s7 = inlined_call_operand.hbm [shape: f32[32,128], index: 7, kind: input, shape index: {}]
  %s8 = inlined_call_operand.vmem [shape: f32[1,128], index: 8, kind: input, shape index: {}]
  %s9 = inlined_call_operand.hbm [shape: f32[64,128], index: 9, kind: output, shape index: {}]
  %s10 = sld [smem:[#allocation0]]
  $region70: #{tpu_custom_call.1} parent=0
    _
  %s12 = ssub.s32 1, %s10
  %s13 = scalar_select 0, %s12, %s10
  $region1: #{tpu_custom_call.1} parent=0
    #allocation4 [shape = 'u8[32768]{0}', space=vmem, size = 0x8000, scoped, tag = 'input window, operand 0, single buffered']
    #allocation5 [shape = 's32[1]{0}', space=sflag, size = 0x4, scoped, tag = 'scoped memory for tpu_custom_call.1']
    #allocation6 [shape = 's32[1]{0}', space=sflag, size = 0x4, scoped, tag = 'scoped memory for tpu_custom_call.1']
    #allocation7 [shape = 'u8[8192]{0}', space=vmem, size = 0x2000, scoped, tag = 'input window, operand 1, single buffered']
    #allocation8 [shape = 's32[1]{0}', space=sflag, size = 0x4, scoped, tag = 'scoped memory for tpu_custom_call.1']
    #allocation9 [shape = 'u8[16384]{0}', space=vmem, size = 0x4000, scoped, tag = 'input window, operand 2, single buffered']
    #allocation10 [shape = 'u8[16384]{0}', space=vmem, size = 0x4000, scoped, tag = 'input window, operand 4, single buffered']
    #allocation11 [shape = 's32[1]{0}', space=sflag, size = 0x4, scoped, tag = 'scoped memory for tpu_custom_call.1']
    #allocation12 [shape = 'u8[16384]{0}', space=vmem, size = 0x4000, scoped, tag = 'input window, operand 5, single buffered']
    #allocation13 [shape = 'u8[16384]{0}', space=vmem, size = 0x4000, scoped, tag = 'input window, operand 7, single buffered']
    #allocation14 [shape = 's32[1]{0}', space=sflag, size = 0x4, scoped, tag = 'scoped memory for tpu_custom_call.1']
    #allocation15 [shape = 'u8[32768]{0}', space=vmem, size = 0x8000, scoped, tag = 'output window, operand 0, single buffered']
    %14 = vsyncpa [#allocation5], 0
    %15 = vsyncpa [#allocation8], 0
    %16 = vsyncpa [#allocation11], 0
    %17 = vsyncpa [#allocation14], 0
    %18 = vsyncpa [#allocation6], 0
    // Predicated region
    $region2: #{tpu_custom_call.1} parent=1 // pred_check
      _
    $region3: #{tpu_custom_call.1} parent=1 // pred_check_branch
      %20 = sbr.rel (0) target = $region5
    $region4: #{tpu_custom_call.1} parent=1 // pred_region
      %22 = vsyncadd [#allocation5], 0
      %s23 = sshll.u32 %s0, 4
      %s24 = int_to_ptr.hbm [resolvable:$true] %s23
      %s25 = sshll.u32 [#allocation4], 4
      %s26 = int_to_ptr.vmem [resolvable:$true] %s25
      %31 = dma.hbm_to_vmem [thread:$0]  %s24, 1024, %s26, [#allocation5], 128, 128, 8
    $region5: #{tpu_custom_call.1} parent=1 // pred_fallthru
      _
    // Predicated region
    $region6: #{tpu_custom_call.1} parent=1 // pred_check
      _
    $region7: #{tpu_custom_call.1} parent=1 // pred_check_branch
      %33 = sbr.rel (0) target = $region9
    $region8: #{tpu_custom_call.1} parent=1 // pred_region
      %35 = vsyncadd [#allocation8], 0
      %s36 = sshll.u32 %s1, 4
      %s37 = int_to_ptr.hbm [resolvable:$true] %s36
      %s38 = sshll.u32 [#allocation7], 4
      %s39 = int_to_ptr.vmem [resolvable:$true] %s38
      %44 = dma.hbm_to_vmem [thread:$0]  %s37, 256, %s39, [#allocation8], 128, 128, 8
    $region9: #{tpu_custom_call.1} parent=1 // pred_fallthru
      _
    // Predicated region
    $region10: #{tpu_custom_call.1} parent=1 // pred_check
      _
    $region11: #{tpu_custom_call.1} parent=1 // pred_check_branch
      %46 = sbr.rel (0) target = $region13
    $region12: #{tpu_custom_call.1} parent=1 // pred_region
      %48 = vsyncadd [#allocation8], 0
      %s49 = sshll.u32 %s2, 4
      %s50 = int_to_ptr.hbm [resolvable:$true] %s49
      %s51 = sshll.u32 [#allocation9], 4
      %s52 = int_to_ptr.vmem [resolvable:$true] %s51
      %57 = dma.hbm_to_vmem [thread:$0]  %s50, 512, %s52, [#allocation8], 128, 128, 8
    $region13: #{tpu_custom_call.1} parent=1 // pred_fallthru
      _
    // Predicated region
    $region14: #{tpu_custom_call.1} parent=1 // pred_check
      _
    $region15: #{tpu_custom_call.1} parent=1 // pred_check_branch
      %59 = sbr.rel (0) target = $region17
    $region16: #{tpu_custom_call.1} parent=1 // pred_region
      _
    $region17: #{tpu_custom_call.1} parent=1 // pred_fallthru
      _
    // Predicated region
    $region18: #{tpu_custom_call.1} parent=1 // pred_check
      _
    $region19: #{tpu_custom_call.1} parent=1 // pred_check_branch
      %61 = sbr.rel (0) target = $region21
    $region20: #{tpu_custom_call.1} parent=1 // pred_region
      %63 = vsyncadd [#allocation11], 0
      %s64 = sshll.u32 %s4, 4
      %s65 = int_to_ptr.hbm [resolvable:$true] %s64
      %s66 = sshll.u32 [#allocation10], 4
      %s67 = int_to_ptr.vmem [resolvable:$true] %s66
      %72 = dma.hbm_to_vmem [thread:$0]  %s65, 512, %s67, [#allocation11], 128, 128, 8
    $region21: #{tpu_custom_call.1} parent=1 // pred_fallthru
      _
    // Predicated region
    $region22: #{tpu_custom_call.1} parent=1 // pred_check
      _
    $region23: #{tpu_custom_call.1} parent=1 // pred_check_branch
      %74 = sbr.rel (0) target = $region25
    $region24: #{tpu_custom_call.1} parent=1 // pred_region
      %76 = vsyncadd [#allocation11], 0
      %s77 = sshll.u32 %s5, 4
      %s78 = int_to_ptr.hbm [resolvable:$true] %s77
      %s79 = sshll.u32 [#allocation12], 4
      %s80 = int_to_ptr.vmem [resolvable:$true] %s79
      %85 = dma.hbm_to_vmem [thread:$0]  %s78, 512, %s80, [#allocation11], 128, 128, 8
    $region25: #{tpu_custom_call.1} parent=1 // pred_fallthru
      _
    // Predicated region
    $region26: #{tpu_custom_call.1} parent=1 // pred_check
      _
    $region27: #{tpu_custom_call.1} parent=1 // pred_check_branch
      %87 = sbr.rel (0) target = $region29
    $region28: #{tpu_custom_call.1} parent=1 // pred_region
      _
    $region29: #{tpu_custom_call.1} parent=1 // pred_fallthru
      _
    // Predicated region
    $region30: #{tpu_custom_call.1} parent=1 // pred_check
      _
    $region31: #{tpu_custom_call.1} parent=1 // pred_check_branch
      %89 = sbr.rel (0) target = $region33
    $region32: #{tpu_custom_call.1} parent=1 // pred_region
      %91 = vsyncadd [#allocation14], 0
      %s92 = sshll.u32 %s7, 4
      %s93 = int_to_ptr.hbm [resolvable:$true] %s92
      %s94 = sshll.u32 [#allocation13], 4
      %s95 = int_to_ptr.vmem [resolvable:$true] %s94
      %100 = dma.hbm_to_vmem [thread:$0]  %s93, 512, %s95, [#allocation14], 128, 128, 8
    $region33: #{tpu_custom_call.1} parent=1 // pred_fallthru
      _
    // Predicated region
    $region34: #{tpu_custom_call.1} parent=1 // pred_check
      _
    $region35: #{tpu_custom_call.1} parent=1 // pred_check_branch
      %102 = sbr.rel (0) target = $region37
    $region36: #{tpu_custom_call.1} parent=1 // pred_region
      _
    $region37: #{tpu_custom_call.1} parent=1 // pred_fallthru
      _
    // Predicated region
    $region38: #{tpu_custom_call.1} parent=1 // pred_check
      _
    $region39: #{tpu_custom_call.1} parent=1 // pred_check_branch
      %104 = sbr.rel (0) target = $region41
    $region40: #{tpu_custom_call.1} parent=1 // pred_region
      %106 = dma.done [#allocation5], 1024
    $region41: #{tpu_custom_call.1} parent=1 // pred_fallthru
      _
    // Predicated region
    $region42: #{tpu_custom_call.1} parent=1 // pred_check
      _
    $region43: #{tpu_custom_call.1} parent=1 // pred_check_branch
      %108 = sbr.rel (0) target = $region45
    $region44: #{tpu_custom_call.1} parent=1 // pred_region
      %110 = dma.done [#allocation8], 256
    $region45: #{tpu_custom_call.1} parent=1 // pred_fallthru
      _
    // Predicated region
    $region46: #{tpu_custom_call.1} parent=1 // pred_check
      _
    $region47: #{tpu_custom_call.1} parent=1 // pred_check_branch
      %112 = sbr.rel (0) target = $region49
    $region48: #{tpu_custom_call.1} parent=1 // pred_region
      %114 = dma.done [#allocation8], 512
    $region49: #{tpu_custom_call.1} parent=1 // pred_fallthru
      _
    // Predicated region
    $region50: #{tpu_custom_call.1} parent=1 // pred_check
      _
    $region51: #{tpu_custom_call.1} parent=1 // pred_check_branch
      %116 = sbr.rel (0) target = $region53
    $region52: #{tpu_custom_call.1} parent=1 // pred_region
      %118 = dma.done [#allocation11], 512
    $region53: #{tpu_custom_call.1} parent=1 // pred_fallthru
      _
    // Predicated region
    $region54: #{tpu_custom_call.1} parent=1 // pred_check
      _
    $region55: #{tpu_custom_call.1} parent=1 // pred_check_branch
      %120 = sbr.rel (0) target = $region57
    $region56: #{tpu_custom_call.1} parent=1 // pred_region
      %122 = dma.done [#allocation11], 512
    $region57: #{tpu_custom_call.1} parent=1 // pred_fallthru
      _
    // Predicated region
    $region58: #{tpu_custom_call.1} parent=1 // pred_check
      _
    $region59: #{tpu_custom_call.1} parent=1 // pred_check_branch
      %124 = sbr.rel (0) target = $region61
    $region60: #{tpu_custom_call.1} parent=1 // pred_region
      %126 = dma.done [#allocation14], 512
    $region61: #{tpu_custom_call.1} parent=1 // pred_fallthru
      _
    %v127 = vld [vmem:[#allocation4] sm:$0xff]
    %v128 = vld [vmem:[#allocation4 + $0x8] sm:$0xff]
    %v129 = vld [vmem:[#allocation4 + $0x10] sm:$0xff]
    %v130 = vld [vmem:[#allocation4 + $0x18] sm:$0xff]
    %v131 = vld [vmem:[#allocation4 + $0x20] sm:$0xff]
    %v132 = vld [vmem:[#allocation4 + $0x28] sm:$0xff]
    %v133 = vld [vmem:[#allocation4 + $0x30] sm:$0xff]
    %v134 = vld [vmem:[#allocation4 + $0x38] sm:$0xff]
    %v135 = vld [vmem:[#allocation7] sm:$0xff]
    %v136 = vld [vmem:[#allocation7 + $0x8] sm:$0xff]
    %v137 = vld [vmem:[%s3] sm:$0x1]
    %v139 = vperm.slane %v137, 0
    %vm141 = vcmask 130048
    %v143 = vsel %vm141, %v127, 0
    %v146 = vsel %vm141, %v128, 0
    %v149 = vsel %vm141, %v129, 0
    %v152 = vsel %vm141, %v130, 0
    %v155 = vsel %vm141, %v131, 0
    %v158 = vsel %vm141, %v132, 0
    %v161 = vsel %vm141, %v133, 0
    %v164 = vsel %vm141, %v134, 0
    %166 = vmatpush.msra.mxu0 0.0
    %167 = vmatpush.msra.mxu0 0.0
    %168 = vmatpush.msra.mxu0 0.0
    %169 = vmatpush.msra.mxu0 0.0
    %170 = vmatpush.msra.mxu0 0.0
    %171 = vmatpush.msra.mxu0 0.0
    %172 = vmatpush.msra.mxu0 0.0
    %173 = vmatpush.msra.mxu0 0.0
    %174 = vmatpush.msra.mxu0 0.0
    %175 = vmatpush.msra.mxu0 0.0
    %176 = vmatpush.msra.mxu0 0.0
    %177 = vmatpush.msra.mxu0 0.0
    %178 = vmatpush.msra.mxu0 0.0
    %179 = vmatpush.msra.mxu0 0.0
    %180 = vmatpush.msra.mxu0 %v136
    %181 = vmatpush.msra.mxu0 %v135
    %182 = vmatmul.f32.gmra.mxu0 %v143
    %v183 = vpop.f32.mrf.mxu0
    %v184 = vadd.f32 %v139, %v183
    %185 = vmatmul.f32.gmra.mxu0 %v146
    %v186 = vpop.f32.mrf.mxu0
    %v187 = vadd.f32 %v139, %v186
    %188 = vmatmul.f32.gmra.mxu0 %v149
    %v189 = vpop.f32.mrf.mxu0
    %v190 = vadd.f32 %v139, %v189
    %191 = vmatmul.f32.gmra.mxu0 %v152
    %v192 = vpop.f32.mrf.mxu0
    %v193 = vadd.f32 %v139, %v192
    %194 = vmatmul.f32.gmra.mxu0 %v155
    %v195 = vpop.f32.mrf.mxu0
    %v196 = vadd.f32 %v139, %v195
    %197 = vmatmul.f32.gmra.mxu0 %v158
    %v198 = vpop.f32.mrf.mxu0
    %v199 = vadd.f32 %v139, %v198
    %200 = vmatmul.f32.gmra.mxu0 %v161
    %v201 = vpop.f32.mrf.mxu0
    %v202 = vadd.f32 %v139, %v201
    %203 = vmatmul.f32.gmra.mxu0 %v164
    %v204 = vpop.f32.mrf.mxu0
    %v205 = vadd.f32 %v139, %v204
    %206 = vdwg.mxu0
    %207 = vst [vmem:[#allocation2] sm:$0xff] %v184
    %208 = vst [vmem:[#allocation2 + $0x8] sm:$0xff] %v187
    %209 = vst [vmem:[#allocation2 + $0x10] sm:$0xff] %v190
    %210 = vst [vmem:[#allocation2 + $0x18] sm:$0xff] %v193
    %211 = vst [vmem:[#allocation2 + $0x20] sm:$0xff] %v196
    %212 = vst [vmem:[#allocation2 + $0x28] sm:$0xff] %v199
    %213 = vst [vmem:[#allocation2 + $0x30] sm:$0xff] %v202
    %214 = vst [vmem:[#allocation2 + $0x38] sm:$0xff] %v205
    %v215 = vld [vmem:[#allocation9] sm:$0xff]
    %v216 = vld [vmem:[#allocation9 + $0x8] sm:$0xff]
    %v217 = vld [vmem:[#allocation9 + $0x10] sm:$0xff]
    %v218 = vld [vmem:[#allocation9 + $0x18] sm:$0xff]
    %v219 = vld [vmem:[#allocation10] sm:$0xff]
    %v220 = vld [vmem:[#allocation10 + $0x8] sm:$0xff]
    %v221 = vld [vmem:[#allocation10 + $0x10] sm:$0xff]
    %v222 = vld [vmem:[#allocation10 + $0x18] sm:$0xff]
    %v223 = vld [vmem:[#allocation12] sm:$0xff]
    %v224 = vld [vmem:[#allocation12 + $0x8] sm:$0xff]
    %v225 = vld [vmem:[#allocation12 + $0x10] sm:$0xff]
    %v226 = vld [vmem:[#allocation12 + $0x18] sm:$0xff]
    %v227 = vld [vmem:[%s6] sm:$0x1]
    %v229 = vperm.slane %v227, 0
    %v231 = vld [vmem:[#allocation2] sm:$0xff]
    %v232 = vxor.u32 %v231, 2147483648
    %v233 = vmul.f32 %v232, 1.442695
    %v234 = vpow.pop %v233
    %v235 = vadd.f32 %v234, 1.0
    %v236 = vrcp.pop %v235
    %v237 = vmul.f32 %v235, %v236
    %v238 = vsub.f32 1.0, %v237
    %v239 = vmul.f32 %v236, %v238
    %v240 = vadd.f32 %v236, %v239
    %vm241 = vweird.f32 %v235
    %vm242 = vweird.f32 %v236
    %vm243 = vmor %vm241, %vm242
    %v244 = vsel %vm243, %v236, %v240
    %v245 = vand.u32 2147483647, %v235
    %vm246 = vcmp.eq.f32.partialorder %v245, 8.507059e+37
    %v247 = vand.u32 %v235, 2147483648
    %v248 = vor.u32 1.1754944e-38, %v247
    %v249 = vsel %vm246, %v248, %v244
    %v250 = vmul.f32 1.0, %v249
    %v251 = vtanh.pop %v231
    %252 = vrot.lane.b32.xlu0 %v250, 96
    %v253 = vpop.permute.xlu0 %252
    %254 = vrot.lane.b32.xlu0 %v251, 64
    %v255 = vpop.permute.xlu0 %254
    %256 = vrot.lane.b32.xlu0 %v250, 32
    %v257 = vpop.permute.xlu0 %256
    %v258 = vmul.f32 %v253, 0.0
    %v259 = vmul.f32 %v250, %v255
    %v260 = vadd.f32 %v258, %v259
    %v261 = vtanh.pop %v260
    %v262 = vmul.f32 %v257, %v261
    %vm263 = vcmask 261120
    %v265 = vsel %vm263, 0.0, 0
    %267 = vmatpush.msra.mxu0 0.0
    %268 = vmatpush.msra.mxu0 0.0
    %269 = vmatpush.msra.mxu0 0.0
    %270 = vmatpush.msra.mxu0 0.0
    %271 = vmatpush.msra.mxu0 0.0
    %272 = vmatpush.msra.mxu0 0.0
    %273 = vmatpush.msra.mxu0 0.0
    %274 = vmatpush.msra.mxu0 0.0
    %275 = vmatpush.msra.mxu0 0.0
    %276 = vmatpush.msra.mxu0 0.0
    %277 = vmatpush.msra.mxu0 0.0
    %278 = vmatpush.msra.mxu0 0.0
    %279 = vmatpush.msra.mxu0 %v226
    %280 = vmatpush.msra.mxu0 %v225
    %281 = vmatpush.msra.mxu0 %v224
    %282 = vmatpush.msra.mxu0 %v223
    %283 = vmatmul.f32.gmra.mxu0 %v265
    %v284 = vpop.f32.mrf.mxu0
    %v285 = vadd.f32 0.0, %v284
    %286 = vdwg.mxu0
    %v288 = vsel %vm263, %v262, 0
    %290 = vmatpush.msra.mxu0 0.0
    %291 = vmatpush.msra.mxu0 0.0
    %292 = vmatpush.msra.mxu0 0.0
    %293 = vmatpush.msra.mxu0 0.0
    %294 = vmatpush.msra.mxu0 0.0
    %295 = vmatpush.msra.mxu0 0.0
    %296 = vmatpush.msra.mxu0 0.0
    %297 = vmatpush.msra.mxu0 0.0
    %298 = vmatpush.msra.mxu0 0.0
    %299 = vmatpush.msra.mxu0 0.0
    %300 = vmatpush.msra.mxu0 0.0
    %301 = vmatpush.msra.mxu0 0.0
    %302 = vmatpush.msra.mxu0 %v222
    %303 = vmatpush.msra.mxu0 %v221
    %304 = vmatpush.msra.mxu0 %v220
    %305 = vmatpush.msra.mxu0 %v219
    %306 = vmatmul.f32.gmra.mxu0 %v288
    %v307 = vpop.f32.mrf.mxu0
    %v308 = vadd.f32 %v285, %v307
    %309 = vdwg.mxu0
    %v310 = vadd.f32 %v308, %v229
    %s311 = scalar_lea.vmem [#allocation2], 8
    %v312 = vld [vmem:[%s311] sm:$0xff]
    %313 = vmatpush.msra.mxu0 0.0
    %314 = vmatpush.msra.mxu0 0.0
    %315 = vmatpush.msra.mxu0 0.0
    %316 = vmatpush.msra.mxu0 0.0
    %317 = vmatpush.msra.mxu0 0.0
    %318 = vmatpush.msra.mxu0 0.0
    %319 = vmatpush.msra.mxu0 0.0
    %320 = vmatpush.msra.mxu0 0.0
    %321 = vmatpush.msra.mxu0 0.0
    %322 = vmatpush.msra.mxu0 0.0
    %323 = vmatpush.msra.mxu0 0.0
    %324 = vmatpush.msra.mxu0 0.0
    %325 = vmatpush.msra.mxu0 %v218
    %326 = vmatpush.msra.mxu0 %v217
    %327 = vmatpush.msra.mxu0 %v216
    %328 = vmatpush.msra.mxu0 %v215
    %329 = vmatmul.f32.gmra.mxu0 %v288
    %v330 = vpop.f32.mrf.mxu0
    %v331 = vadd.f32 0.0, %v330
    %332 = vdwg.mxu0
    %v333 = vadd.f32 %v312, %v331
    %v334 = vxor.u32 %v310, 2147483648
    %v335 = vmul.f32 %v334, 1.442695
    %v336 = vpow.pop %v335
    %v337 = vadd.f32 %v336, 1.0
    %v338 = vrcp.pop %v337
    %v339 = vmul.f32 %v337, %v338
    %v340 = vsub.f32 1.0, %v339
    %v341 = vmul.f32 %v338, %v340
    %v342 = vadd.f32 %v338, %v341
    %vm343 = vweird.f32 %v337
    %vm344 = vweird.f32 %v338
    %vm345 = vmor %vm343, %vm344
    %v346 = vsel %vm345, %v338, %v342
    %v347 = vand.u32 2147483647, %v337
    %vm348 = vcmp.eq.f32.partialorder %v347, 8.507059e+37
    %v349 = vand.u32 %v337, 2147483648
    %v350 = vor.u32 1.1754944e-38, %v349
    %v351 = vsel %vm348, %v350, %v346
    %v352 = vmul.f32 1.0, %v351
    %v353 = vtanh.pop %v310
    %354 = vrot.lane.b32.xlu0 %v352, 96
    %v355 = vpop.permute.xlu0 %354
    %356 = vrot.lane.b32.xlu0 %v353, 64
    %v357 = vpop.permute.xlu0 %356
    %358 = vrot.lane.b32.xlu0 %v352, 32
    %v359 = vpop.permute.xlu0 %358
    %v360 = vmul.f32 %v355, 0.0
    %v361 = vmul.f32 %v352, %v357
    %v362 = vadd.f32 %v360, %v361
    %v363 = vtanh.pop %v362
    %v364 = vmul.f32 %v359, %v363
    %365 = vst.msk [vmem:[#allocation3] sm:$0xff] %vm263, %v364
    %v366 = vxor.u32 %v333, 2147483648
    %v367 = vmul.f32 %v366, 1.442695
    %v368 = vpow.pop %v367
    %v369 = vadd.f32 %v368, 1.0
    %v370 = vrcp.pop %v369
    %v371 = vmul.f32 %v369, %v370
    %v372 = vsub.f32 1.0, %v371
    %v373 = vmul.f32 %v370, %v372
    %v374 = vadd.f32 %v370, %v373
    %vm375 = vweird.f32 %v369
    %vm376 = vweird.f32 %v370
    %vm377 = vmor %vm375, %vm376
    %v378 = vsel %vm377, %v370, %v374
    %v379 = vand.u32 2147483647, %v369
    %vm380 = vcmp.eq.f32.partialorder %v379, 8.507059e+37
    %v381 = vand.u32 %v369, 2147483648
    %v382 = vor.u32 1.1754944e-38, %v381
    %v383 = vsel %vm380, %v382, %v378
    %v384 = vmul.f32 1.0, %v383
    %v385 = vtanh.pop %v333
    %386 = vrot.lane.b32.xlu0 %v384, 96
    %v387 = vpop.permute.xlu0 %386
    %388 = vrot.lane.b32.xlu0 %v385, 64
    %v389 = vpop.permute.xlu0 %388
    %390 = vrot.lane.b32.xlu0 %v384, 32
    %v391 = vpop.permute.xlu0 %390
    %v392 = vmul.f32 %v387, %v260
    %v393 = vmul.f32 %v384, %v389
    %v394 = vadd.f32 %v392, %v393
    %v395 = vtanh.pop %v394
    %v396 = vmul.f32 %v391, %v395
    %v398 = vsel %vm263, %v364, 0
    %400 = vmatpush.msra.mxu0 0.0
    %401 = vmatpush.msra.mxu0 0.0
    %402 = vmatpush.msra.mxu0 0.0
    %403 = vmatpush.msra.mxu0 0.0
    %404 = vmatpush.msra.mxu0 0.0
    %405 = vmatpush.msra.mxu0 0.0
    %406 = vmatpush.msra.mxu0 0.0
    %407 = vmatpush.msra.mxu0 0.0
    %408 = vmatpush.msra.mxu0 0.0
    %409 = vmatpush.msra.mxu0 0.0
    %410 = vmatpush.msra.mxu0 0.0
    %411 = vmatpush.msra.mxu0 0.0
    %412 = vmatpush.msra.mxu0 %v226
    %413 = vmatpush.msra.mxu0 %v225
    %414 = vmatpush.msra.mxu0 %v224
    %415 = vmatpush.msra.mxu0 %v223
    %416 = vmatmul.f32.gmra.mxu0 %v398
    %v417 = vpop.f32.mrf.mxu0
    %v418 = vadd.f32 0.0, %v417
    %419 = vdwg.mxu0
    %v421 = vsel %vm263, %v396, 0
    %423 = vmatpush.msra.mxu0 0.0
    %424 = vmatpush.msra.mxu0 0.0
    %425 = vmatpush.msra.mxu0 0.0
    %426 = vmatpush.msra.mxu0 0.0
    %427 = vmatpush.msra.mxu0 0.0
    %428 = vmatpush.msra.mxu0 0.0
    %429 = vmatpush.msra.mxu0 0.0
    %430 = vmatpush.msra.mxu0 0.0
    %431 = vmatpush.msra.mxu0 0.0
    %432 = vmatpush.msra.mxu0 0.0
    %433 = vmatpush.msra.mxu0 0.0
    %434 = vmatpush.msra.mxu0 0.0
    %435 = vmatpush.msra.mxu0 %v222
    %436 = vmatpush.msra.mxu0 %v221
    %437 = vmatpush.msra.mxu0 %v220
    %438 = vmatpush.msra.mxu0 %v219
    %439 = vmatmul.f32.gmra.mxu0 %v421
    %v440 = vpop.f32.mrf.mxu0
    %v441 = vadd.f32 %v418, %v440
    %442 = vdwg.mxu0
    %v443 = vadd.f32 %v441, %v229
    %s444 = scalar_lea.vmem [#allocation2], 16
    %v445 = vld [vmem:[%s444] sm:$0xff]
    %446 = vmatpush.msra.mxu0 0.0
    %447 = vmatpush.msra.mxu0 0.0
    %448 = vmatpush.msra.mxu0 0.0
    %449 = vmatpush.msra.mxu0 0.0
    %450 = vmatpush.msra.mxu0 0.0
    %451 = vmatpush.msra.mxu0 0.0
    %452 = vmatpush.msra.mxu0 0.0
    %453 = vmatpush.msra.mxu0 0.0
    %454 = vmatpush.msra.mxu0 0.0
    %455 = vmatpush.msra.mxu0 0.0
    %456 = vmatpush.msra.mxu0 0.0
    %457 = vmatpush.msra.mxu0 0.0
    %458 = vmatpush.msra.mxu0 %v218
    %459 = vmatpush.msra.mxu0 %v217
    %460 = vmatpush.msra.mxu0 %v216
    %461 = vmatpush.msra.mxu0 %v215
    %462 = vmatmul.f32.gmra.mxu0 %v421
    %v463 = vpop.f32.mrf.mxu0
    %v464 = vadd.f32 0.0, %v463
    %465 = vdwg.mxu0
    %v466 = vadd.f32 %v445, %v464
    %v467 = vxor.u32 %v443, 2147483648
    %v468 = vmul.f32 %v467, 1.442695
    %v469 = vpow.pop %v468
    %v470 = vadd.f32 %v469, 1.0
    %v471 = vrcp.pop %v470
    %v472 = vmul.f32 %v470, %v471
    %v473 = vsub.f32 1.0, %v472
    %v474 = vmul.f32 %v471, %v473
    %v475 = vadd.f32 %v471, %v474
    %vm476 = vweird.f32 %v470
    %vm477 = vweird.f32 %v471
    %vm478 = vmor %vm476, %vm477
    %v479 = vsel %vm478, %v471, %v475
    %v480 = vand.u32 2147483647, %v470
    %vm481 = vcmp.eq.f32.partialorder %v480, 8.507059e+37
    %v482 = vand.u32 %v470, 2147483648
    %v483 = vor.u32 1.1754944e-38, %v482
    %v484 = vsel %vm481, %v483, %v479
    %v485 = vmul.f32 1.0, %v484
    %v486 = vtanh.pop %v443
    %487 = vrot.lane.b32.xlu0 %v485, 96
    %v488 = vpop.permute.xlu0 %487
    %489 = vrot.lane.b32.xlu0 %v486, 64
    %v490 = vpop.permute.xlu0 %489
    %491 = vrot.lane.b32.xlu0 %v485, 32
    %v492 = vpop.permute.xlu0 %491
    %v493 = vmul.f32 %v488, %v362
    %v494 = vmul.f32 %v485, %v490
    %v495 = vadd.f32 %v493, %v494
    %v496 = vtanh.pop %v495
    %v497 = vmul.f32 %v492, %v496
    %s498 = scalar_lea.vmem [#allocation3], 8
    %499 = vst.msk [vmem:[%s498] sm:$0xff] %vm263, %v497
    %v500 = vxor.u32 %v466, 2147483648
    %v501 = vmul.f32 %v500, 1.442695
    %v502 = vpow.pop %v501
    %v503 = vadd.f32 %v502, 1.0
    %v504 = vrcp.pop %v503
    %v505 = vmul.f32 %v503, %v504
    %v506 = vsub.f32 1.0, %v505
    %v507 = vmul.f32 %v504, %v506
    %v508 = vadd.f32 %v504, %v507
    %vm509 = vweird.f32 %v503
    %vm510 = vweird.f32 %v504
    %vm511 = vmor %vm509, %vm510
    %v512 = vsel %vm511, %v504, %v508
    %v513 = vand.u32 2147483647, %v503
    %vm514 = vcmp.eq.f32.partialorder %v513, 8.507059e+37
    %v515 = vand.u32 %v503, 2147483648
    %v516 = vor.u32 1.1754944e-38, %v515
    %v517 = vsel %vm514, %v516, %v512
    %v518 = vmul.f32 1.0, %v517
    %v519 = vtanh.pop %v466
    %520 = vrot.lane.b32.xlu0 %v518, 96
    %v521 = vpop.permute.xlu0 %520
    %522 = vrot.lane.b32.xlu0 %v519, 64
    %v523 = vpop.permute.xlu0 %522
    %524 = vrot.lane.b32.xlu0 %v518, 32
    %v525 = vpop.permute.xlu0 %524
    %v526 = vmul.f32 %v521, %v394
    %v527 = vmul.f32 %v518, %v523
    %v528 = vadd.f32 %v526, %v527
    %v529 = vtanh.pop %v528
    %v530 = vmul.f32 %v525, %v529
    %v532 = vsel %vm263, %v497, 0
    %534 = vmatpush.msra.mxu0 0.0
    %535 = vmatpush.msra.mxu0 0.0
    %536 = vmatpush.msra.mxu0 0.0
    %537 = vmatpush.msra.mxu0 0.0
    %538 = vmatpush.msra.mxu0 0.0
    %539 = vmatpush.msra.mxu0 0.0
    %540 = vmatpush.msra.mxu0 0.0
    %541 = vmatpush.msra.mxu0 0.0
    %542 = vmatpush.msra.mxu0 0.0
    %543 = vmatpush.msra.mxu0 0.0
    %544 = vmatpush.msra.mxu0 0.0
    %545 = vmatpush.msra.mxu0 0.0
    %546 = vmatpush.msra.mxu0 %v226
    %547 = vmatpush.msra.mxu0 %v225
    %548 = vmatpush.msra.mxu0 %v224
    %549 = vmatpush.msra.mxu0 %v223
    %550 = vmatmul.f32.gmra.mxu0 %v532
    %v551 = vpop.f32.mrf.mxu0
    %v552 = vadd.f32 0.0, %v551
    %553 = vdwg.mxu0
    %v555 = vsel %vm263, %v530, 0
    %557 = vmatpush.msra.mxu0 0.0
    %558 = vmatpush.msra.mxu0 0.0
    %559 = vmatpush.msra.mxu0 0.0
    %560 = vmatpush.msra.mxu0 0.0
    %561 = vmatpush.msra.mxu0 0.0
    %562 = vmatpush.msra.mxu0 0.0
    %563 = vmatpush.msra.mxu0 0.0
    %564 = vmatpush.msra.mxu0 0.0
    %565 = vmatpush.msra.mxu0 0.0
    %566 = vmatpush.msra.mxu0 0.0
    %567 = vmatpush.msra.mxu0 0.0
    %568 = vmatpush.msra.mxu0 0.0
    %569 = vmatpush.msra.mxu0 %v222
    %570 = vmatpush.msra.mxu0 %v221
    %571 = vmatpush.msra.mxu0 %v220
    %572 = vmatpush.msra.mxu0 %v219
    %573 = vmatmul.f32.gmra.mxu0 %v555
    %v574 = vpop.f32.mrf.mxu0
    %v575 = vadd.f32 %v552, %v574
    %576 = vdwg.mxu0
    %v577 = vadd.f32 %v575, %v229
    %s578 = scalar_lea.vmem [#allocation2], 24
    %v579 = vld [vmem:[%s578] sm:$0xff]
    %580 = vmatpush.msra.mxu0 0.0
    %581 = vmatpush.msra.mxu0 0.0
    %582 = vmatpush.msra.mxu0 0.0
    %583 = vmatpush.msra.mxu0 0.0
    %584 = vmatpush.msra.mxu0 0.0
    %585 = vmatpush.msra.mxu0 0.0
    %586 = vmatpush.msra.mxu0 0.0
    %587 = vmatpush.msra.mxu0 0.0
    %588 = vmatpush.msra.mxu0 0.0
    %589 = vmatpush.msra.mxu0 0.0
    %590 = vmatpush.msra.mxu0 0.0
    %591 = vmatpush.msra.mxu0 0.0
    %592 = vmatpush.msra.mxu0 %v218
    %593 = vmatpush.msra.mxu0 %v217
    %594 = vmatpush.msra.mxu0 %v216
    %595 = vmatpush.msra.mxu0 %v215
    %596 = vmatmul.f32.gmra.mxu0 %v555
    %v597 = vpop.f32.mrf.mxu0
    %v598 = vadd.f32 0.0, %v597
    %599 = vdwg.mxu0
    %v600 = vadd.f32 %v579, %v598
    %v601 = vxor.u32 %v577, 2147483648
    %v602 = vmul.f32 %v601, 1.442695
    %v603 = vpow.pop %v602
    %v604 = vadd.f32 %v603, 1.0
    %v605 = vrcp.pop %v604
    %v606 = vmul.f32 %v604, %v605
    %v607 = vsub.f32 1.0, %v606
    %v608 = vmul.f32 %v605, %v607
    %v609 = vadd.f32 %v605, %v608
    %vm610 = vweird.f32 %v604
    %vm611 = vweird.f32 %v605
    %vm612 = vmor %vm610, %vm611
    %v613 = vsel %vm612, %v605, %v609
    %v614 = vand.u32 2147483647, %v604
    %vm615 = vcmp.eq.f32.partialorder %v614, 8.507059e+37
    %v616 = vand.u32 %v604, 2147483648
    %v617 = vor.u32 1.1754944e-38, %v616
    %v618 = vsel %vm615, %v617, %v613
    %v619 = vmul.f32 1.0, %v618
    %v620 = vtanh.pop %v577
    %621 = vrot.lane.b32.xlu0 %v619, 96
    %v622 = vpop.permute.xlu0 %621
    %623 = vrot.lane.b32.xlu0 %v620, 64
    %v624 = vpop.permute.xlu0 %623
    %625 = vrot.lane.b32.xlu0 %v619, 32
    %v626 = vpop.permute.xlu0 %625
    %v627 = vmul.f32 %v622, %v495
    %v628 = vmul.f32 %v619, %v624
    %v629 = vadd.f32 %v627, %v628
    %v630 = vtanh.pop %v629
    %v631 = vmul.f32 %v626, %v630
    %s632 = scalar_lea.vmem [#allocation3], 16
    %633 = vst.msk [vmem:[%s632] sm:$0xff] %vm263, %v631
    %v634 = vxor.u32 %v600, 2147483648
    %v635 = vmul.f32 %v634, 1.442695
    %v636 = vpow.pop %v635
    %v637 = vadd.f32 %v636, 1.0
    %v638 = vrcp.pop %v637
    %v639 = vmul.f32 %v637, %v638
    %v640 = vsub.f32 1.0, %v639
    %v641 = vmul.f32 %v638, %v640
    %v642 = vadd.f32 %v638, %v641
    %vm643 = vweird.f32 %v637
    %vm644 = vweird.f32 %v638
    %vm645 = vmor %vm643, %vm644
    %v646 = vsel %vm645, %v638, %v642
    %v647 = vand.u32 2147483647, %v637
    %vm648 = vcmp.eq.f32.partialorder %v647, 8.507059e+37
    %v649 = vand.u32 %v637, 2147483648
    %v650 = vor.u32 1.1754944e-38, %v649
    %v651 = vsel %vm648, %v650, %v646
    %v652 = vmul.f32 1.0, %v651
    %v653 = vtanh.pop %v600
    %654 = vrot.lane.b32.xlu0 %v652, 96
    %v655 = vpop.permute.xlu0 %654
    %656 = vrot.lane.b32.xlu0 %v653, 64
    %v657 = vpop.permute.xlu0 %656
    %658 = vrot.lane.b32.xlu0 %v652, 32
    %v659 = vpop.permute.xlu0 %658
    %v660 = vmul.f32 %v655, %v528
    %v661 = vmul.f32 %v652, %v657
    %v662 = vadd.f32 %v660, %v661
    %v663 = vtanh.pop %v662
    %v664 = vmul.f32 %v659, %v663
    %v666 = vsel %vm263, %v631, 0
    %668 = vmatpush.msra.mxu0 0.0
    %669 = vmatpush.msra.mxu0 0.0
    %670 = vmatpush.msra.mxu0 0.0
    %671 = vmatpush.msra.mxu0 0.0
    %672 = vmatpush.msra.mxu0 0.0
    %673 = vmatpush.msra.mxu0 0.0
    %674 = vmatpush.msra.mxu0 0.0
    %675 = vmatpush.msra.mxu0 0.0
    %676 = vmatpush.msra.mxu0 0.0
    %677 = vmatpush.msra.mxu0 0.0
    %678 = vmatpush.msra.mxu0 0.0
    %679 = vmatpush.msra.mxu0 0.0
    %680 = vmatpush.msra.mxu0 %v226
    %681 = vmatpush.msra.mxu0 %v225
    %682 = vmatpush.msra.mxu0 %v224
    %683 = vmatpush.msra.mxu0 %v223
    %684 = vmatmul.f32.gmra.mxu0 %v666
    %v685 = vpop.f32.mrf.mxu0
    %v686 = vadd.f32 0.0, %v685
    %687 = vdwg.mxu0
    %v689 = vsel %vm263, %v664, 0
    %691 = vmatpush.msra.mxu0 0.0
    %692 = vmatpush.msra.mxu0 0.0
    %693 = vmatpush.msra.mxu0 0.0
    %694 = vmatpush.msra.mxu0 0.0
    %695 = vmatpush.msra.mxu0 0.0
    %696 = vmatpush.msra.mxu0 0.0
    %697 = vmatpush.msra.mxu0 0.0
    %698 = vmatpush.msra.mxu0 0.0
    %699 = vmatpush.msra.mxu0 0.0
    %700 = vmatpush.msra.mxu0 0.0
    %701 = vmatpush.msra.mxu0 0.0
    %702 = vmatpush.msra.mxu0 0.0
    %703 = vmatpush.msra.mxu0 %v222
    %704 = vmatpush.msra.mxu0 %v221
    %705 = vmatpush.msra.mxu0 %v220
    %706 = vmatpush.msra.mxu0 %v219
    %707 = vmatmul.f32.gmra.mxu0 %v689
    %v708 = vpop.f32.mrf.mxu0
    %v709 = vadd.f32 %v686, %v708
    %710 = vdwg.mxu0
    %v711 = vadd.f32 %v709, %v229
    %s712 = scalar_lea.vmem [#allocation2], 32
    %v713 = vld [vmem:[%s712] sm:$0xff]
    %714 = vmatpush.msra.mxu0 0.0
    %715 = vmatpush.msra.mxu0 0.0
    %716 = vmatpush.msra.mxu0 0.0
    %717 = vmatpush.msra.mxu0 0.0
    %718 = vmatpush.msra.mxu0 0.0
    %719 = vmatpush.msra.mxu0 0.0
    %720 = vmatpush.msra.mxu0 0.0
    %721 = vmatpush.msra.mxu0 0.0
    %722 = vmatpush.msra.mxu0 0.0
    %723 = vmatpush.msra.mxu0 0.0
    %724 = vmatpush.msra.mxu0 0.0
    %725 = vmatpush.msra.mxu0 0.0
    %726 = vmatpush.msra.mxu0 %v218
    %727 = vmatpush.msra.mxu0 %v217
    %728 = vmatpush.msra.mxu0 %v216
    %729 = vmatpush.msra.mxu0 %v215
    %730 = vmatmul.f32.gmra.mxu0 %v689
    %v731 = vpop.f32.mrf.mxu0
    %v732 = vadd.f32 0.0, %v731
    %733 = vdwg.mxu0
    %v734 = vadd.f32 %v713, %v732
    %v735 = vxor.u32 %v711, 2147483648
    %v736 = vmul.f32 %v735, 1.442695
    %v737 = vpow.pop %v736
    %v738 = vadd.f32 %v737, 1.0
    %v739 = vrcp.pop %v738
    %v740 = vmul.f32 %v738, %v739
    %v741 = vsub.f32 1.0, %v740
    %v742 = vmul.f32 %v739, %v741
    %v743 = vadd.f32 %v739, %v742
    %vm744 = vweird.f32 %v738
    %vm745 = vweird.f32 %v739
    %vm746 = vmor %vm744, %vm745
    %v747 = vsel %vm746, %v739, %v743
    %v748 = vand.u32 2147483647, %v738
    %vm749 = vcmp.eq.f32.partialorder %v748, 8.507059e+37
    %v750 = vand.u32 %v738, 2147483648
    %v751 = vor.u32 1.1754944e-38, %v750
    %v752 = vsel %vm749, %v751, %v747
    %v753 = vmul.f32 1.0, %v752
    %v754 = vtanh.pop %v711
    %755 = vrot.lane.b32.xlu0 %v753, 96
    %v756 = vpop.permute.xlu0 %755
    %757 = vrot.lane.b32.xlu0 %v754, 64
    %v758 = vpop.permute.xlu0 %757
    %759 = vrot.lane.b32.xlu0 %v753, 32
    %v760 = vpop.permute.xlu0 %759
    %v761 = vmul.f32 %v756, %v629
    %v762 = vmul.f32 %v753, %v758
    %v763 = vadd.f32 %v761, %v762
    %v764 = vtanh.pop %v763
    %v765 = vmul.f32 %v760, %v764
    %s766 = scalar_lea.vmem [#allocation3], 24
    %767 = vst.msk [vmem:[%s766] sm:$0xff] %vm263, %v765
    %v768 = vxor.u32 %v734, 2147483648
    %v769 = vmul.f32 %v768, 1.442695
    %v770 = vpow.pop %v769
    %v771 = vadd.f32 %v770, 1.0
    %v772 = vrcp.pop %v771
    %v773 = vmul.f32 %v771, %v772
    %v774 = vsub.f32 1.0, %v773
    %v775 = vmul.f32 %v772, %v774
    %v776 = vadd.f32 %v772, %v775
    %vm777 = vweird.f32 %v771
    %vm778 = vweird.f32 %v772
    %vm779 = vmor %vm777, %vm778
    %v780 = vsel %vm779, %v772, %v776
    %v781 = vand.u32 2147483647, %v771
    %vm782 = vcmp.eq.f32.partialorder %v781, 8.507059e+37
    %v783 = vand.u32 %v771, 2147483648
    %v784 = vor.u32 1.1754944e-38, %v783
    %v785 = vsel %vm782, %v784, %v780
    %v786 = vmul.f32 1.0, %v785
    %v787 = vtanh.pop %v734
    %788 = vrot.lane.b32.xlu0 %v786, 96
    %v789 = vpop.permute.xlu0 %788
    %790 = vrot.lane.b32.xlu0 %v787, 64
    %v791 = vpop.permute.xlu0 %790
    %792 = vrot.lane.b32.xlu0 %v786, 32
    %v793 = vpop.permute.xlu0 %792
    %v794 = vmul.f32 %v789, %v662
    %v795 = vmul.f32 %v786, %v791
    %v796 = vadd.f32 %v794, %v795
    %v797 = vtanh.pop %v796
    %v798 = vmul.f32 %v793, %v797
    %v800 = vsel %vm263, %v765, 0
    %802 = vmatpush.msra.mxu0 0.0
    %803 = vmatpush.msra.mxu0 0.0
    %804 = vmatpush.msra.mxu0 0.0
    %805 = vmatpush.msra.mxu0 0.0
    %806 = vmatpush.msra.mxu0 0.0
    %807 = vmatpush.msra.mxu0 0.0
    %808 = vmatpush.msra.mxu0 0.0
    %809 = vmatpush.msra.mxu0 0.0
    %810 = vmatpush.msra.mxu0 0.0
    %811 = vmatpush.msra.mxu0 0.0
    %812 = vmatpush.msra.mxu0 0.0
    %813 = vmatpush.msra.mxu0 0.0
    %814 = vmatpush.msra.mxu0 %v226
    %815 = vmatpush.msra.mxu0 %v225
    %816 = vmatpush.msra.mxu0 %v224
    %817 = vmatpush.msra.mxu0 %v223
    %818 = vmatmul.f32.gmra.mxu0 %v800
    %v819 = vpop.f32.mrf.mxu0
    %v820 = vadd.f32 0.0, %v819
    %821 = vdwg.mxu0
    %v823 = vsel %vm263, %v798, 0
    %825 = vmatpush.msra.mxu0 0.0
    %826 = vmatpush.msra.mxu0 0.0
    %827 = vmatpush.msra.mxu0 0.0
    %828 = vmatpush.msra.mxu0 0.0
    %829 = vmatpush.msra.mxu0 0.0
    %830 = vmatpush.msra.mxu0 0.0
    %831 = vmatpush.msra.mxu0 0.0
    %832 = vmatpush.msra.mxu0 0.0
    %833 = vmatpush.msra.mxu0 0.0
    %834 = vmatpush.msra.mxu0 0.0
    %835 = vmatpush.msra.mxu0 0.0
    %836 = vmatpush.msra.mxu0 0.0
    %837 = vmatpush.msra.mxu0 %v222
    %838 = vmatpush.msra.mxu0 %v221
    %839 = vmatpush.msra.mxu0 %v220
    %840 = vmatpush.msra.mxu0 %v219
    %841 = vmatmul.f32.gmra.mxu0 %v823
    %v842 = vpop.f32.mrf.mxu0
    %v843 = vadd.f32 %v820, %v842
    %844 = vdwg.mxu0
    %v845 = vadd.f32 %v843, %v229
    %s846 = scalar_lea.vmem [#allocation2], 40
    %v847 = vld [vmem:[%s846] sm:$0xff]
    %848 = vmatpush.msra.mxu0 0.0
    %849 = vmatpush.msra.mxu0 0.0
    %850 = vmatpush.msra.mxu0 0.0
    %851 = vmatpush.msra.mxu0 0.0
    %852 = vmatpush.msra.mxu0 0.0
    %853 = vmatpush.msra.mxu0 0.0
    %854 = vmatpush.msra.mxu0 0.0
    %855 = vmatpush.msra.mxu0 0.0
    %856 = vmatpush.msra.mxu0 0.0
    %857 = vmatpush.msra.mxu0 0.0
    %858 = vmatpush.msra.mxu0 0.0
    %859 = vmatpush.msra.mxu0 0.0
    %860 = vmatpush.msra.mxu0 %v218
    %861 = vmatpush.msra.mxu0 %v217
    %862 = vmatpush.msra.mxu0 %v216
    %863 = vmatpush.msra.mxu0 %v215
    %864 = vmatmul.f32.gmra.mxu0 %v823
    %v865 = vpop.f32.mrf.mxu0
    %v866 = vadd.f32 0.0, %v865
    %867 = vdwg.mxu0
    %v868 = vadd.f32 %v847, %v866
    %v869 = vxor.u32 %v845, 2147483648
    %v870 = vmul.f32 %v869, 1.442695
    %v871 = vpow.pop %v870
    %v872 = vadd.f32 %v871, 1.0
    %v873 = vrcp.pop %v872
    %v874 = vmul.f32 %v872, %v873
    %v875 = vsub.f32 1.0, %v874
    %v876 = vmul.f32 %v873, %v875
    %v877 = vadd.f32 %v873, %v876
    %vm878 = vweird.f32 %v872
    %vm879 = vweird.f32 %v873
    %vm880 = vmor %vm878, %vm879
    %v881 = vsel %vm880, %v873, %v877
    %v882 = vand.u32 2147483647, %v872
    %vm883 = vcmp.eq.f32.partialorder %v882, 8.507059e+37
    %v884 = vand.u32 %v872, 2147483648
    %v885 = vor.u32 1.1754944e-38, %v884
    %v886 = vsel %vm883, %v885, %v881
    %v887 = vmul.f32 1.0, %v886
    %v888 = vtanh.pop %v845
    %889 = vrot.lane.b32.xlu0 %v887, 96
    %v890 = vpop.permute.xlu0 %889
    %891 = vrot.lane.b32.xlu0 %v888, 64
    %v892 = vpop.permute.xlu0 %891
    %893 = vrot.lane.b32.xlu0 %v887, 32
    %v894 = vpop.permute.xlu0 %893
    %v895 = vmul.f32 %v890, %v763
    %v896 = vmul.f32 %v887, %v892
    %v897 = vadd.f32 %v895, %v896
    %v898 = vtanh.pop %v897
    %v899 = vmul.f32 %v894, %v898
    %s900 = scalar_lea.vmem [#allocation3], 32
    %901 = vst.msk [vmem:[%s900] sm:$0xff] %vm263, %v899
    %v902 = vxor.u32 %v868, 2147483648
    %v903 = vmul.f32 %v902, 1.442695
    %v904 = vpow.pop %v903
    %v905 = vadd.f32 %v904, 1.0
    %v906 = vrcp.pop %v905
    %v907 = vmul.f32 %v905, %v906
    %v908 = vsub.f32 1.0, %v907
    %v909 = vmul.f32 %v906, %v908
    %v910 = vadd.f32 %v906, %v909
    %vm911 = vweird.f32 %v905
    %vm912 = vweird.f32 %v906
    %vm913 = vmor %vm911, %vm912
    %v914 = vsel %vm913, %v906, %v910
    %v915 = vand.u32 2147483647, %v905
    %vm916 = vcmp.eq.f32.partialorder %v915, 8.507059e+37
    %v917 = vand.u32 %v905, 2147483648
    %v918 = vor.u32 1.1754944e-38, %v917
    %v919 = vsel %vm916, %v918, %v914
    %v920 = vmul.f32 1.0, %v919
    %v921 = vtanh.pop %v868
    %922 = vrot.lane.b32.xlu0 %v920, 96
    %v923 = vpop.permute.xlu0 %922
    %924 = vrot.lane.b32.xlu0 %v921, 64
    %v925 = vpop.permute.xlu0 %924
    %926 = vrot.lane.b32.xlu0 %v920, 32
    %v927 = vpop.permute.xlu0 %926
    %v928 = vmul.f32 %v923, %v796
    %v929 = vmul.f32 %v920, %v925
    %v930 = vadd.f32 %v928, %v929
    %v931 = vtanh.pop %v930
    %v932 = vmul.f32 %v927, %v931
    %v934 = vsel %vm263, %v899, 0
    %936 = vmatpush.msra.mxu0 0.0
    %937 = vmatpush.msra.mxu0 0.0
    %938 = vmatpush.msra.mxu0 0.0
    %939 = vmatpush.msra.mxu0 0.0
    %940 = vmatpush.msra.mxu0 0.0
    %941 = vmatpush.msra.mxu0 0.0
    %942 = vmatpush.msra.mxu0 0.0
    %943 = vmatpush.msra.mxu0 0.0
    %944 = vmatpush.msra.mxu0 0.0
    %945 = vmatpush.msra.mxu0 0.0
    %946 = vmatpush.msra.mxu0 0.0
    %947 = vmatpush.msra.mxu0 0.0
    %948 = vmatpush.msra.mxu0 %v226
    %949 = vmatpush.msra.mxu0 %v225
    %950 = vmatpush.msra.mxu0 %v224
    %951 = vmatpush.msra.mxu0 %v223
    %952 = vmatmul.f32.gmra.mxu0 %v934
    %v953 = vpop.f32.mrf.mxu0
    %v954 = vadd.f32 0.0, %v953
    %955 = vdwg.mxu0
    %v957 = vsel %vm263, %v932, 0
    %959 = vmatpush.msra.mxu0 0.0
    %960 = vmatpush.msra.mxu0 0.0
    %961 = vmatpush.msra.mxu0 0.0
    %962 = vmatpush.msra.mxu0 0.0
    %963 = vmatpush.msra.mxu0 0.0
    %964 = vmatpush.msra.mxu0 0.0
    %965 = vmatpush.msra.mxu0 0.0
    %966 = vmatpush.msra.mxu0 0.0
    %967 = vmatpush.msra.mxu0 0.0
    %968 = vmatpush.msra.mxu0 0.0
    %969 = vmatpush.msra.mxu0 0.0
    %970 = vmatpush.msra.mxu0 0.0
    %971 = vmatpush.msra.mxu0 %v222
    %972 = vmatpush.msra.mxu0 %v221
    %973 = vmatpush.msra.mxu0 %v220
    %974 = vmatpush.msra.mxu0 %v219
    %975 = vmatmul.f32.gmra.mxu0 %v957
    %v976 = vpop.f32.mrf.mxu0
    %v977 = vadd.f32 %v954, %v976
    %978 = vdwg.mxu0
    %v979 = vadd.f32 %v977, %v229
    %s980 = scalar_lea.vmem [#allocation2], 48
    %v981 = vld [vmem:[%s980] sm:$0xff]
    %982 = vmatpush.msra.mxu0 0.0
    %983 = vmatpush.msra.mxu0 0.0
    %984 = vmatpush.msra.mxu0 0.0
    %985 = vmatpush.msra.mxu0 0.0
    %986 = vmatpush.msra.mxu0 0.0
    %987 = vmatpush.msra.mxu0 0.0
    %988 = vmatpush.msra.mxu0 0.0
    %989 = vmatpush.msra.mxu0 0.0
    %990 = vmatpush.msra.mxu0 0.0
    %991 = vmatpush.msra.mxu0 0.0
    %992 = vmatpush.msra.mxu0 0.0
    %993 = vmatpush.msra.mxu0 0.0
    %994 = vmatpush.msra.mxu0 %v218
    %995 = vmatpush.msra.mxu0 %v217
    %996 = vmatpush.msra.mxu0 %v216
    %997 = vmatpush.msra.mxu0 %v215
    %998 = vmatmul.f32.gmra.mxu0 %v957
    %v999 = vpop.f32.mrf.mxu0
    %v1000 = vadd.f32 0.0, %v999
    %1001 = vdwg.mxu0
    %v1002 = vadd.f32 %v981, %v1000
    %v1003 = vxor.u32 %v979, 2147483648
    %v1004 = vmul.f32 %v1003, 1.442695
    %v1005 = vpow.pop %v1004
    %v1006 = vadd.f32 %v1005, 1.0
    %v1007 = vrcp.pop %v1006
    %v1008 = vmul.f32 %v1006, %v1007
    %v1009 = vsub.f32 1.0, %v1008
    %v1010 = vmul.f32 %v1007, %v1009
    %v1011 = vadd.f32 %v1007, %v1010
    %vm1012 = vweird.f32 %v1006
    %vm1013 = vweird.f32 %v1007
    %vm1014 = vmor %vm1012, %vm1013
    %v1015 = vsel %vm1014, %v1007, %v1011
    %v1016 = vand.u32 2147483647, %v1006
    %vm1017 = vcmp.eq.f32.partialorder %v1016, 8.507059e+37
    %v1018 = vand.u32 %v1006, 2147483648
    %v1019 = vor.u32 1.1754944e-38, %v1018
    %v1020 = vsel %vm1017, %v1019, %v1015
    %v1021 = vmul.f32 1.0, %v1020
    %v1022 = vtanh.pop %v979
    %1023 = vrot.lane.b32.xlu0 %v1021, 96
    %v1024 = vpop.permute.xlu0 %1023
    %1025 = vrot.lane.b32.xlu0 %v1022, 64
    %v1026 = vpop.permute.xlu0 %1025
    %1027 = vrot.lane.b32.xlu0 %v1021, 32
    %v1028 = vpop.permute.xlu0 %1027
    %v1029 = vmul.f32 %v1024, %v897
    %v1030 = vmul.f32 %v1021, %v1026
    %v1031 = vadd.f32 %v1029, %v1030
    %v1032 = vtanh.pop %v1031
    %v1033 = vmul.f32 %v1028, %v1032
    %s1034 = scalar_lea.vmem [#allocation3], 40
    %1035 = vst.msk [vmem:[%s1034] sm:$0xff] %vm263, %v1033
    %v1036 = vxor.u32 %v1002, 2147483648
    %v1037 = vmul.f32 %v1036, 1.442695
    %v1038 = vpow.pop %v1037
    %v1039 = vadd.f32 %v1038, 1.0
    %v1040 = vrcp.pop %v1039
    %v1041 = vmul.f32 %v1039, %v1040
    %v1042 = vsub.f32 1.0, %v1041
    %v1043 = vmul.f32 %v1040, %v1042
    %v1044 = vadd.f32 %v1040, %v1043
    %vm1045 = vweird.f32 %v1039
    %vm1046 = vweird.f32 %v1040
    %vm1047 = vmor %vm1045, %vm1046
    %v1048 = vsel %vm1047, %v1040, %v1044
    %v1049 = vand.u32 2147483647, %v1039
    %vm1050 = vcmp.eq.f32.partialorder %v1049, 8.507059e+37
    %v1051 = vand.u32 %v1039, 2147483648
    %v1052 = vor.u32 1.1754944e-38, %v1051
    %v1053 = vsel %vm1050, %v1052, %v1048
    %v1054 = vmul.f32 1.0, %v1053
    %v1055 = vtanh.pop %v1002
    %1056 = vrot.lane.b32.xlu0 %v1054, 96
    %v1057 = vpop.permute.xlu0 %1056
    %1058 = vrot.lane.b32.xlu0 %v1055, 64
    %v1059 = vpop.permute.xlu0 %1058
    %1060 = vrot.lane.b32.xlu0 %v1054, 32
    %v1061 = vpop.permute.xlu0 %1060
    %v1062 = vmul.f32 %v1057, %v930
    %v1063 = vmul.f32 %v1054, %v1059
    %v1064 = vadd.f32 %v1062, %v1063
    %v1065 = vtanh.pop %v1064
    %v1066 = vmul.f32 %v1061, %v1065
    %v1068 = vsel %vm263, %v1033, 0
    %1070 = vmatpush.msra.mxu0 0.0
    %1071 = vmatpush.msra.mxu0 0.0
    %1072 = vmatpush.msra.mxu0 0.0
    %1073 = vmatpush.msra.mxu0 0.0
    %1074 = vmatpush.msra.mxu0 0.0
    %1075 = vmatpush.msra.mxu0 0.0
    %1076 = vmatpush.msra.mxu0 0.0
    %1077 = vmatpush.msra.mxu0 0.0
    %1078 = vmatpush.msra.mxu0 0.0
    %1079 = vmatpush.msra.mxu0 0.0
    %1080 = vmatpush.msra.mxu0 0.0
    %1081 = vmatpush.msra.mxu0 0.0
    %1082 = vmatpush.msra.mxu0 %v226
    %1083 = vmatpush.msra.mxu0 %v225
    %1084 = vmatpush.msra.mxu0 %v224
    %1085 = vmatpush.msra.mxu0 %v223
    %1086 = vmatmul.f32.gmra.mxu0 %v1068
    %v1087 = vpop.f32.mrf.mxu0
    %v1088 = vadd.f32 0.0, %v1087
    %1089 = vdwg.mxu0
    %v1091 = vsel %vm263, %v1066, 0
    %1093 = vmatpush.msra.mxu0 0.0
    %1094 = vmatpush.msra.mxu0 0.0
    %1095 = vmatpush.msra.mxu0 0.0
    %1096 = vmatpush.msra.mxu0 0.0
    %1097 = vmatpush.msra.mxu0 0.0
    %1098 = vmatpush.msra.mxu0 0.0
    %1099 = vmatpush.msra.mxu0 0.0
    %1100 = vmatpush.msra.mxu0 0.0
    %1101 = vmatpush.msra.mxu0 0.0
    %1102 = vmatpush.msra.mxu0 0.0
    %1103 = vmatpush.msra.mxu0 0.0
    %1104 = vmatpush.msra.mxu0 0.0
    %1105 = vmatpush.msra.mxu0 %v222
    %1106 = vmatpush.msra.mxu0 %v221
    %1107 = vmatpush.msra.mxu0 %v220
    %1108 = vmatpush.msra.mxu0 %v219
    %1109 = vmatmul.f32.gmra.mxu0 %v1091
    %v1110 = vpop.f32.mrf.mxu0
    %v1111 = vadd.f32 %v1088, %v1110
    %1112 = vdwg.mxu0
    %v1113 = vadd.f32 %v1111, %v229
    %s1114 = scalar_lea.vmem [#allocation2], 56
    %v1115 = vld [vmem:[%s1114] sm:$0xff]
    %1116 = vmatpush.msra.mxu0 0.0
    %1117 = vmatpush.msra.mxu0 0.0
    %1118 = vmatpush.msra.mxu0 0.0
    %1119 = vmatpush.msra.mxu0 0.0
    %1120 = vmatpush.msra.mxu0 0.0
    %1121 = vmatpush.msra.mxu0 0.0
    %1122 = vmatpush.msra.mxu0 0.0
    %1123 = vmatpush.msra.mxu0 0.0
    %1124 = vmatpush.msra.mxu0 0.0
    %1125 = vmatpush.msra.mxu0 0.0
    %1126 = vmatpush.msra.mxu0 0.0
    %1127 = vmatpush.msra.mxu0 0.0
    %1128 = vmatpush.msra.mxu0 %v218
    %1129 = vmatpush.msra.mxu0 %v217
    %1130 = vmatpush.msra.mxu0 %v216
    %1131 = vmatpush.msra.mxu0 %v215
    %1132 = vmatmul.f32.gmra.mxu0 %v1091
    %v1133 = vpop.f32.mrf.mxu0
    %v1134 = vadd.f32 0.0, %v1133
    %1135 = vdwg.mxu0
    %v1136 = vadd.f32 %v1115, %v1134
    %v1137 = vxor.u32 %v1113, 2147483648
    %v1138 = vmul.f32 %v1137, 1.442695
    %v1139 = vpow.pop %v1138
    %v1140 = vadd.f32 %v1139, 1.0
    %v1141 = vrcp.pop %v1140
    %v1142 = vmul.f32 %v1140, %v1141
    %v1143 = vsub.f32 1.0, %v1142
    %v1144 = vmul.f32 %v1141, %v1143
    %v1145 = vadd.f32 %v1141, %v1144
    %vm1146 = vweird.f32 %v1140
    %vm1147 = vweird.f32 %v1141
    %vm1148 = vmor %vm1146, %vm1147
    %v1149 = vsel %vm1148, %v1141, %v1145
    %v1150 = vand.u32 2147483647, %v1140
    %vm1151 = vcmp.eq.f32.partialorder %v1150, 8.507059e+37
    %v1152 = vand.u32 %v1140, 2147483648
    %v1153 = vor.u32 1.1754944e-38, %v1152
    %v1154 = vsel %vm1151, %v1153, %v1149
    %v1155 = vmul.f32 1.0, %v1154
    %v1156 = vtanh.pop %v1113
    %1157 = vrot.lane.b32.xlu0 %v1155, 96
    %v1158 = vpop.permute.xlu0 %1157
    %1159 = vrot.lane.b32.xlu0 %v1156, 64
    %v1160 = vpop.permute.xlu0 %1159
    %1161 = vrot.lane.b32.xlu0 %v1155, 32
    %v1162 = vpop.permute.xlu0 %1161
    %v1163 = vmul.f32 %v1158, %v1031
    %v1164 = vmul.f32 %v1155, %v1160
    %v1165 = vadd.f32 %v1163, %v1164
    %v1166 = vtanh.pop %v1165
    %v1167 = vmul.f32 %v1162, %v1166
    %s1168 = scalar_lea.vmem [#allocation3], 48
    %1169 = vst.msk [vmem:[%s1168] sm:$0xff] %vm263, %v1167
    %v1170 = vxor.u32 %v1136, 2147483648
    %v1171 = vmul.f32 %v1170, 1.442695
    %v1172 = vpow.pop %v1171
    %v1173 = vadd.f32 %v1172, 1.0
    %v1174 = vrcp.pop %v1173
    %v1175 = vmul.f32 %v1173, %v1174
    %v1176 = vsub.f32 1.0, %v1175
    %v1177 = vmul.f32 %v1174, %v1176
    %v1178 = vadd.f32 %v1174, %v1177
    %vm1179 = vweird.f32 %v1173
    %vm1180 = vweird.f32 %v1174
    %vm1181 = vmor %vm1179, %vm1180
    %v1182 = vsel %vm1181, %v1174, %v1178
    %v1183 = vand.u32 2147483647, %v1173
    %vm1184 = vcmp.eq.f32.partialorder %v1183, 8.507059e+37
    %v1185 = vand.u32 %v1173, 2147483648
    %v1186 = vor.u32 1.1754944e-38, %v1185
    %v1187 = vsel %vm1184, %v1186, %v1182
    %v1188 = vmul.f32 1.0, %v1187
    %v1189 = vtanh.pop %v1136
    %1190 = vrot.lane.b32.xlu0 %v1188, 96
    %v1191 = vpop.permute.xlu0 %1190
    %1192 = vrot.lane.b32.xlu0 %v1189, 64
    %v1193 = vpop.permute.xlu0 %1192
    %1194 = vrot.lane.b32.xlu0 %v1188, 32
    %v1195 = vpop.permute.xlu0 %1194
    %v1196 = vmul.f32 %v1191, %v1064
    %v1197 = vmul.f32 %v1188, %v1193
    %v1198 = vadd.f32 %v1196, %v1197
    %v1199 = vtanh.pop %v1198
    %v1200 = vmul.f32 %v1195, %v1199
    %v1202 = vsel %vm263, %v1167, 0
    %1204 = vmatpush.msra.mxu0 0.0
    %1205 = vmatpush.msra.mxu0 0.0
    %1206 = vmatpush.msra.mxu0 0.0
    %1207 = vmatpush.msra.mxu0 0.0
    %1208 = vmatpush.msra.mxu0 0.0
    %1209 = vmatpush.msra.mxu0 0.0
    %1210 = vmatpush.msra.mxu0 0.0
    %1211 = vmatpush.msra.mxu0 0.0
    %1212 = vmatpush.msra.mxu0 0.0
    %1213 = vmatpush.msra.mxu0 0.0
    %1214 = vmatpush.msra.mxu0 0.0
    %1215 = vmatpush.msra.mxu0 0.0
    %1216 = vmatpush.msra.mxu0 %v226
    %1217 = vmatpush.msra.mxu0 %v225
    %1218 = vmatpush.msra.mxu0 %v224
    %1219 = vmatpush.msra.mxu0 %v223
    %1220 = vmatmul.f32.gmra.mxu0 %v1202
    %v1221 = vpop.f32.mrf.mxu0
    %v1222 = vadd.f32 0.0, %v1221
    %1223 = vdwg.mxu0
    %v1225 = vsel %vm263, %v1200, 0
    %1227 = vmatpush.msra.mxu0 0.0
    %1228 = vmatpush.msra.mxu0 0.0
    %1229 = vmatpush.msra.mxu0 0.0
    %1230 = vmatpush.msra.mxu0 0.0
    %1231 = vmatpush.msra.mxu0 0.0
    %1232 = vmatpush.msra.mxu0 0.0
    %1233 = vmatpush.msra.mxu0 0.0
    %1234 = vmatpush.msra.mxu0 0.0
    %1235 = vmatpush.msra.mxu0 0.0
    %1236 = vmatpush.msra.mxu0 0.0
    %1237 = vmatpush.msra.mxu0 0.0
    %1238 = vmatpush.msra.mxu0 0.0
    %1239 = vmatpush.msra.mxu0 %v222
    %1240 = vmatpush.msra.mxu0 %v221
    %1241 = vmatpush.msra.mxu0 %v220
    %1242 = vmatpush.msra.mxu0 %v219
    %1243 = vmatmul.f32.gmra.mxu0 %v1225
    %v1244 = vpop.f32.mrf.mxu0
    %v1245 = vadd.f32 %v1222, %v1244
    %1246 = vdwg.mxu0
    %v1247 = vadd.f32 %v1245, %v229
    %v1248 = vxor.u32 %v1247, 2147483648
    %v1249 = vmul.f32 %v1248, 1.442695
    %v1250 = vpow.pop %v1249
    %v1251 = vadd.f32 %v1250, 1.0
    %v1252 = vrcp.pop %v1251
    %v1253 = vmul.f32 %v1251, %v1252
    %v1254 = vsub.f32 1.0, %v1253
    %v1255 = vmul.f32 %v1252, %v1254
    %v1256 = vadd.f32 %v1252, %v1255
    %vm1257 = vweird.f32 %v1251
    %vm1258 = vweird.f32 %v1252
    %vm1259 = vmor %vm1257, %vm1258
    %v1260 = vsel %vm1259, %v1252, %v1256
    %v1261 = vand.u32 2147483647, %v1251
    %vm1262 = vcmp.eq.f32.partialorder %v1261, 8.507059e+37
    %v1263 = vand.u32 %v1251, 2147483648
    %v1264 = vor.u32 1.1754944e-38, %v1263
    %v1265 = vsel %vm1262, %v1264, %v1260
    %v1266 = vmul.f32 1.0, %v1265
    %v1267 = vtanh.pop %v1247
    %1268 = vrot.lane.b32.xlu0 %v1266, 96
    %v1269 = vpop.permute.xlu0 %1268
    %1270 = vrot.lane.b32.xlu0 %v1267, 64
    %v1271 = vpop.permute.xlu0 %1270
    %1272 = vrot.lane.b32.xlu0 %v1266, 32
    %v1273 = vpop.permute.xlu0 %1272
    %v1274 = vmul.f32 %v1269, %v1165
    %v1275 = vmul.f32 %v1266, %v1271
    %v1276 = vadd.f32 %v1274, %v1275
    %v1277 = vtanh.pop %v1276
    %v1278 = vmul.f32 %v1273, %v1277
    %s1279 = scalar_lea.vmem [#allocation3], 56
    %1280 = vst.msk [vmem:[%s1279] sm:$0xff] %vm263, %v1278
    %v1281 = vld [vmem:[#allocation3] sm:$0xff]
    %v1282 = vld [vmem:[#allocation3 + $0x8] sm:$0xff]
    %v1283 = vld [vmem:[#allocation3 + $0x10] sm:$0xff]
    %v1284 = vld [vmem:[#allocation3 + $0x18] sm:$0xff]
    %v1285 = vld [vmem:[#allocation3 + $0x20] sm:$0xff]
    %v1286 = vld [vmem:[#allocation3 + $0x28] sm:$0xff]
    %v1287 = vld [vmem:[#allocation3 + $0x30] sm:$0xff]
    %v1288 = vld [vmem:[#allocation3 + $0x38] sm:$0xff]
    %v1289 = vld [vmem:[#allocation13] sm:$0xff]
    %v1290 = vld [vmem:[#allocation13 + $0x8] sm:$0xff]
    %v1291 = vld [vmem:[#allocation13 + $0x10] sm:$0xff]
    %v1292 = vld [vmem:[#allocation13 + $0x18] sm:$0xff]
    %v1293 = vld [vmem:[%s8] sm:$0x1]
    %v1295 = vperm.slane %v1293, 0
    %v1298 = vsel %vm263, %v1281, 0
    %v1301 = vsel %vm263, %v1282, 0
    %v1304 = vsel %vm263, %v1283, 0
    %v1307 = vsel %vm263, %v1284, 0
    %v1310 = vsel %vm263, %v1285, 0
    %v1313 = vsel %vm263, %v1286, 0
    %v1316 = vsel %vm263, %v1287, 0
    %v1319 = vsel %vm263, %v1288, 0
    %1321 = vmatpush.msra.mxu0 0.0
    %1322 = vmatpush.msra.mxu0 0.0
    %1323 = vmatpush.msra.mxu0 0.0
    %1324 = vmatpush.msra.mxu0 0.0
    %1325 = vmatpush.msra.mxu0 0.0
    %1326 = vmatpush.msra.mxu0 0.0
    %1327 = vmatpush.msra.mxu0 0.0
    %1328 = vmatpush.msra.mxu0 0.0
    %1329 = vmatpush.msra.mxu0 0.0
    %1330 = vmatpush.msra.mxu0 0.0
    %1331 = vmatpush.msra.mxu0 0.0
    %1332 = vmatpush.msra.mxu0 0.0
    %1333 = vmatpush.msra.mxu0 %v1292
    %1334 = vmatpush.msra.mxu0 %v1291
    %1335 = vmatpush.msra.mxu0 %v1290
    %1336 = vmatpush.msra.mxu0 %v1289
    %1337 = vmatmul.f32.gmra.mxu0 %v1298
    %v1338 = vpop.f32.mrf.mxu0
    %v1339 = vadd.f32 %v1295, %v1338
    %1340 = vmatmul.f32.gmra.mxu0 %v1301
    %v1341 = vpop.f32.mrf.mxu0
    %v1342 = vadd.f32 %v1295, %v1341
    %1343 = vmatmul.f32.gmra.mxu0 %v1304
    %v1344 = vpop.f32.mrf.mxu0
    %v1345 = vadd.f32 %v1295, %v1344
    %1346 = vmatmul.f32.gmra.mxu0 %v1307
    %v1347 = vpop.f32.mrf.mxu0
    %v1348 = vadd.f32 %v1295, %v1347
    %1349 = vmatmul.f32.gmra.mxu0 %v1310
    %v1350 = vpop.f32.mrf.mxu0
    %v1351 = vadd.f32 %v1295, %v1350
    %1352 = vmatmul.f32.gmra.mxu0 %v1313
    %v1353 = vpop.f32.mrf.mxu0
    %v1354 = vadd.f32 %v1295, %v1353
    %1355 = vmatmul.f32.gmra.mxu0 %v1316
    %v1356 = vpop.f32.mrf.mxu0
    %v1357 = vadd.f32 %v1295, %v1356
    %1358 = vmatmul.f32.gmra.mxu0 %v1319
    %v1359 = vpop.f32.mrf.mxu0
    %v1360 = vadd.f32 %v1295, %v1359
    %1361 = vdwg.mxu0
    %1362 = vst [vmem:[#allocation15] sm:$0xff] %v1339
    %1363 = vst [vmem:[#allocation15 + $0x8] sm:$0xff] %v1342
    %1364 = vst [vmem:[#allocation15 + $0x10] sm:$0xff] %v1345
    %1365 = vst [vmem:[#allocation15 + $0x18] sm:$0xff] %v1348
    %1366 = vst [vmem:[#allocation15 + $0x20] sm:$0xff] %v1351
    %1367 = vst [vmem:[#allocation15 + $0x28] sm:$0xff] %v1354
    %1368 = vst [vmem:[#allocation15 + $0x30] sm:$0xff] %v1357
    %1369 = vst [vmem:[#allocation15 + $0x38] sm:$0xff] %v1360
    // Predicated region
    $region62: #{tpu_custom_call.1} parent=1 // pred_check
      _
    $region63: #{tpu_custom_call.1} parent=1 // pred_check_branch
      %1371 = sbr.rel (0) target = $region65
    $region64: #{tpu_custom_call.1} parent=1 // pred_region
      %1373 = vsyncadd [#allocation6], 0
      %s1374 = sshll.u32 [#allocation15], 4
      %s1375 = int_to_ptr.vmem [resolvable:$true] %s1374
      %s1376 = sshll.u32 %s9, 4
      %s1377 = int_to_ptr.hbm [resolvable:$true] %s1376
      %1382 = dma.vmem_to_hbm [thread:$0]  %s1375, 1024, %s1377, [#allocation6], 128, 128, 8
    $region65: #{tpu_custom_call.1} parent=1 // pred_fallthru
      _
    // Predicated region
    $region66: #{tpu_custom_call.1} parent=1 // pred_check
      _
    $region67: #{tpu_custom_call.1} parent=1 // pred_check_branch
      %1384 = sbr.rel (0) target = $region69
    $region68: #{tpu_custom_call.1} parent=1 // pred_region
      %1386 = dma.done [#allocation6], 1024
    $region69: #{tpu_custom_call.1} parent=1 // pred_fallthru
      _
    %1387 = vsyncpa [#allocation5], 1
    %1388 = vsyncpa [#allocation8], 1
    %1389 = vsyncpa [#allocation11], 1
    %1390 = vsyncpa [#allocation14], 1
    %1391 = vsyncpa [#allocation6], 1

</llo_original>
